<compile_context>
chip_gen: v7x
topology: tpu7x:2x2x1
jax: 0.10.0
libtpu: 0.0.40
codegen_flags: <defaults>
</compile_context>

<pallas_src>
import jax
import jax.numpy as jnp
from jax.experimental import pallas as pl
from jax.experimental.pallas import tpu as pltpu


def _self_attention_kernel(x_ref, wt_ref, bw_ref, uw_ref, bu_ref, o_ref):
    # x_ref:  (TB, T, D)  tile of TB batch elements
    # wt_ref: (D, H)      = W.weight.T   (VMEM, resident across grid steps)
    # bw_ref: (1, H)      = W.bias       (VMEM)
    # uw_ref: (1, H)      = u.weight row (VMEM)
    # bu_ref: (1,)        = u.bias       (SMEM scalar)
    # o_ref:  (TB, D)
    TB, T, D = x_ref.shape
    H = wt_ref.shape[1]

    # --- First linear + tanh: one big-M MXU matmul with f32 accumulation. ---
    x2 = x_ref[...].reshape(TB * T, D)               # fold batch tile into M
    h = jnp.tanh(
        jnp.dot(x2, wt_ref[...], preferred_element_type=jnp.float32)
        + bw_ref[...].astype(jnp.float32)
    )                                                # (TB*T, H) f32

    # --- Second linear (out_features == 1) on the VPU/XLU, lane-packed. ---
    u_row = uw_ref[...].astype(jnp.float32).reshape(1, 1, H)
    s = jnp.sum(h.reshape(TB, T, H) * u_row, axis=-1) + bu_ref[0]   # (TB, T) f32

    # --- Softmax over the sequence axis, all along the lane dimension. ---
    m = jnp.max(s, axis=-1, keepdims=True)           # (TB, 1)
    e = jnp.exp(s - m)                               # (TB, T)
    # Exact reciprocal: operand is only (TB, 1); approx=True isn't worth the
    # numerics here.
    a = e * pl.reciprocal(jnp.sum(e, axis=-1, keepdims=True), approx=False)

    # --- Weighted sum over T -> sublane-dense (TB, D) store. ---
    # Re-read x from VMEM here instead of holding the earlier load live across
    # the matmul/softmax (keeps vreg pressure down at large TB).
    x3 = x_ref[...].astype(jnp.float32)              # (TB, T, D)
    o_ref[...] = jnp.sum(a[:, :, None] * x3, axis=1).astype(o_ref.dtype)


def _round_up(x, m):
    return ((x + m - 1) // m) * m


def _choose_block_b(B, T, D, dtype_bytes, target_tile_bytes):
    """Largest batch tile (multiple of 8) with an ~target-sized x slab,
    capped so the grid keeps >= 2 steps (v7x has 2 TensorCores)."""
    if B <= 8:
        return B                                     # single tile == full batch
    tb_vmem = max(8, (target_tile_bytes // max(1, T * D * dtype_bytes)) // 8 * 8)
    tb_two_steps = _round_up(pl.cdiv(B, 2), 8)       # never collapse to grid=1
    tb = min(tb_vmem, tb_two_steps, _round_up(B, 8))
    return max(8, tb)


def self_attention(x, w_weight, w_bias, u_weight, u_bias, *,
                   block_b=None, target_tile_bytes=1 << 20):
    """x: (B, T, D); w_weight: (H, D); w_bias: (H,); u_weight: (1, H); u_bias: (1,)."""
    B, T, D = x.shape
    H = w_weight.shape[0]
    dtype_bytes = jnp.dtype(x.dtype).itemsize

    if block_b is None:
        TB = _choose_block_b(B, T, D, dtype_bytes, target_tile_bytes)
    else:
        if block_b % 8 != 0 and block_b != B:
            raise ValueError("block_b must be a multiple of 8 (or equal to B)")
        TB = block_b

    grid = (pl.cdiv(B, TB),)

    # Explicit VMEM budget (double-buffered x tile + output + weights +
    # intermediates), with headroom, capped safely under v7x's 64 MiB physical.
    x_tile = TB * T * D * dtype_bytes
    out_tile = TB * D * dtype_bytes
    w_bytes = (D * H + 2 * H) * 4
    inter = TB * T * (H + D + 4) * 4                 # h, a*x product, logits/exp
    vmem_bytes = int(1.5 * (2 * x_tile + 2 * out_tile + 2 * w_bytes + inter))
    vmem_bytes = min(max(vmem_bytes, 32 << 20), 48 << 20)

    wt = w_weight.T                               # (D, H)
    bw = w_bias.reshape(1, H)                     # (1, H)
    uw = u_weight.reshape(1, H)                   # (1, H) row layout
    bu = u_bias.reshape(1).astype(jnp.float32)    # (1,) scalar -> SMEM

    cost = pl.CostEstimate(
        flops=2 * B * T * D * H + 2 * B * T * H + 2 * B * T * D,
        transcendentals=B * T * H + B * T,        # tanh + exp
        bytes_accessed=x.size * dtype_bytes + B * D * dtype_bytes + w_bytes,
    )

    out = pl.pallas_call(
        _self_attention_kernel,
        out_shape=jax.ShapeDtypeStruct((B, D), x.dtype),
        grid_spec=pltpu.PrefetchScalarGridSpec(
            num_scalar_prefetch=0,
            grid=grid,
            in_specs=[
                # TODO(synk): if xprof still shows exposed DMA on x after the
                # larger tiles, add pipeline_mode=pl.Buffered(3) here and
                # recount vmem_bytes for 3 buffers.
                pl.BlockSpec((TB, T, D), lambda b: (b, 0, 0)),
                pl.BlockSpec((D, H), lambda b: (0, 0)),
                pl.BlockSpec((1, H), lambda b: (0, 0)),
                pl.BlockSpec((1, H), lambda b: (0, 0)),
                pl.BlockSpec(memory_space=pltpu.MemorySpace.SMEM),
            ],
            out_specs=pl.BlockSpec((TB, D), lambda b: (b, 0)),
        ),
        compiler_params=pltpu.CompilerParams(
            dimension_semantics=("parallel",),
            vmem_limit_bytes=vmem_bytes,
        ),
        cost_estimate=cost,
    )(x, wt, bw, uw, bu)

    return out


def self_attention_ref(x, w_weight, w_bias, u_weight, u_bias):
    """Pure-JAX reference matching the PyTorch forward."""
    u = jnp.tanh(jnp.einsum("btd,hd->bth", x, w_weight) + w_bias)      # (B,T,H)
    s = jnp.einsum("bth,oh->bto", u, u_weight) + u_bias                # (B,T,1)
    a = jax.nn.softmax(s, axis=1)                                      # (B,T,1)
    return jnp.sum(a * x, axis=1)                                      # (B,D)


if __name__ == "__main__":
    T = 8                    # sequence length
    input_size = 32          # D
    hidden_size = 32         # H

    key = jax.random.PRNGKey(0)
    kx, kw, kbw, ku, kbu = jax.random.split(key, 5)

    # Deterministic parameters (shapes follow nn.Linear: weight is (out, in)).
    w_weight = 0.1 * jax.random.normal(kw, (hidden_size, input_size), dtype=jnp.float32)
    w_bias = 0.1 * jax.random.normal(kbw, (hidden_size,), dtype=jnp.float32)
    u_weight = 0.1 * jax.random.normal(ku, (1, hidden_size), dtype=jnp.float32)
    u_bias = 0.1 * jax.random.normal(kbu, (1,), dtype=jnp.float32)

    # B=48 -> TB=24, grid=2 (divisible).  B=20 -> TB=16, grid=2 with a ragged
    # last tile, exercising the no-pad masked-block path.
    for B in (48, 20):
        x = jax.random.normal(jax.random.fold_in(kx, B), (B, T, input_size),
                              dtype=jnp.float32)
        out = jax.block_until_ready(
            self_attention(x, w_weight, w_bias, u_weight, u_bias))
        ref = self_attention_ref(x, w_weight, w_bias, u_weight, u_bias)
        assert out.shape == (B, input_size)
        assert jnp.allclose(out, ref, atol=1e-5, rtol=1e-5), \
            f"mismatch vs reference (B={B})"

    print("KERNEL_OK")
</pallas_src>

<mosaic_0001>
module attributes {stable_mosaic.version = 11 : i64} {
  func.func @_self_attention_kernel(%arg0: i32, %arg1: memref<24x8x32xf32, #tpu.memory_space<vmem>>, %arg2: memref<32x32xf32, #tpu.memory_space<vmem>>, %arg3: memref<1x32xf32, #tpu.memory_space<vmem>>, %arg4: memref<1x32xf32, #tpu.memory_space<vmem>>, %arg5: memref<1xf32, #tpu.memory_space<smem>>, %arg6: memref<24x32xf32, #tpu.memory_space<vmem>>) attributes {dimension_semantics = [#tpu.dimension_semantics<parallel>], iteration_bounds = array<i64: 2>, scalar_prefetch = 0 : i64, scratch_operands = 0 : i64, tpu.core_type = #tpu.core_type<tc>, window_params = [{transform_indices = @transform_0, window_bounds = array<i64: 24, 8, 32>}, {pipeline_mode = #tpu.pipeline_mode<synchronous>, transform_indices = @transform_1, window_bounds = array<i64: 32, 32>}, {pipeline_mode = #tpu.pipeline_mode<synchronous>, transform_indices = @transform_2, window_bounds = array<i64: 1, 32>}, {pipeline_mode = #tpu.pipeline_mode<synchronous>, transform_indices = @transform_3, window_bounds = array<i64: 1, 32>}, {transform_indices = @transform_4, window_bounds = array<i64: 1>}, {transform_indices = @transform_5, window_bounds = array<i64: 24, 32>}]} {
    %c0 = arith.constant 0 : index
    %c0_0 = arith.constant 0 : index
    %c0_1 = arith.constant 0 : index
    %0 = vector.load %arg1[%c0, %c0_0, %c0_1] : memref<24x8x32xf32, #tpu.memory_space<vmem>>, vector<24x8x32xf32>
    %1 = vector.shape_cast %0 : vector<24x8x32xf32> to vector<192x32xf32>
    %c0_2 = arith.constant 0 : index
    %c0_3 = arith.constant 0 : index
    %2 = vector.load %arg2[%c0_2, %c0_3] : memref<32x32xf32, #tpu.memory_space<vmem>>, vector<32x32xf32>
    %cst = arith.constant dense<0.000000e+00> : vector<192x32xf32>
    %3 = tpu.matmul %1, %2, %cst {dimension_numbers = #tpu.dot_dimension_numbers<[1], [0], [0], [1], [0, 0, 1, 1], [], []>} : vector<192x32xf32>, vector<32x32xf32>, vector<192x32xf32> -> vector<192x32xf32>
    %c0_4 = arith.constant 0 : index
    %c0_5 = arith.constant 0 : index
    %4 = vector.load %arg3[%c0_4, %c0_5] : memref<1x32xf32, #tpu.memory_space<vmem>>, vector<1x32xf32>
    %5 = vector.broadcast %4 : vector<1x32xf32> to vector<192x32xf32>
    %6 = arith.addf %3, %5 : vector<192x32xf32>
    %7 = math.tanh %6 : vector<192x32xf32>
    %c0_6 = arith.constant 0 : index
    %c0_7 = arith.constant 0 : index
    %8 = vector.load %arg4[%c0_6, %c0_7] : memref<1x32xf32, #tpu.memory_space<vmem>>, vector<1x32xf32>
    %9 = vector.shape_cast %8 : vector<1x32xf32> to vector<1x1x32xf32>
    %10 = vector.shape_cast %7 : vector<192x32xf32> to vector<24x8x32xf32>
    %11 = vector.broadcast %9 : vector<1x1x32xf32> to vector<24x8x32xf32>
    %12 = arith.mulf %10, %11 : vector<24x8x32xf32>
    %cst_8 = arith.constant dense<0.000000e+00> : vector<24x8xf32>
    %13 = vector.multi_reduction <add>, %12, %cst_8 [2] : vector<24x8x32xf32> to vector<24x8xf32>
    %c0_9 = arith.constant 0 : index
    %14 = memref.load %arg5[%c0_9] : memref<1xf32, #tpu.memory_space<smem>>
    %15 = vector.broadcast %14 : f32 to vector<24x8xf32>
    %16 = arith.addf %13, %15 : vector<24x8xf32>
    %cst_10 = arith.constant dense<0xFF800000> : vector<24xf32>
    %17 = vector.multi_reduction <maximumf>, %16, %cst_10 [1] : vector<24x8xf32> to vector<24xf32>
    %18 = vector.shape_cast %17 : vector<24xf32> to vector<24x1xf32>
    %19 = vector.broadcast %18 : vector<24x1xf32> to vector<24x8xf32>
    %20 = arith.subf %16, %19 : vector<24x8xf32>
    %21 = math.exp %20 : vector<24x8xf32>
    %cst_11 = arith.constant dense<0.000000e+00> : vector<24xf32>
    %22 = vector.multi_reduction <add>, %21, %cst_11 [1] : vector<24x8xf32> to vector<24xf32>
    %23 = vector.shape_cast %22 : vector<24xf32> to vector<24x1xf32>
    %24 = tpu.reciprocal %23 : vector<24x1xf32> -> vector<24x1xf32>
    %25 = vector.broadcast %24 : vector<24x1xf32> to vector<24x8xf32>
    %26 = arith.mulf %21, %25 : vector<24x8xf32>
    %c0_12 = arith.constant 0 : index
    %c0_13 = arith.constant 0 : index
    %c0_14 = arith.constant 0 : index
    %27 = vector.load %arg1[%c0_12, %c0_13, %c0_14] : memref<24x8x32xf32, #tpu.memory_space<vmem>>, vector<24x8x32xf32>
    %28 = vector.shape_cast %26 : vector<24x8xf32> to vector<24x8x1xf32>
    %29 = vector.broadcast %28 : vector<24x8x1xf32> to vector<24x8x32xf32>
    %30 = arith.mulf %29, %27 : vector<24x8x32xf32>
    %cst_15 = arith.constant dense<0.000000e+00> : vector<24x32xf32>
    %31 = vector.multi_reduction <add>, %30, %cst_15 [1] : vector<24x8x32xf32> to vector<24x32xf32>
    %c0_16 = arith.constant 0 : index
    %c0_17 = arith.constant 0 : index
    %32 = vector.load %arg6[%c0_16, %c0_17] : memref<24x32xf32, #tpu.memory_space<vmem>>, vector<24x32xf32>
    tpu.vector_store %arg6[%c0_16, %c0_17], %31 {strides = array<i32>} : memref<24x32xf32, #tpu.memory_space<vmem>>, vector<24x32xf32>,
    return
  }
  func.func @transform_0(%arg0: i32) -> (i32, i32, i32) {
    %c0_i32 = arith.constant 0 : i32
    %c0_i32_0 = arith.constant 0 : i32
    %c0_i32_1 = arith.constant 0 : i32
    return %arg0, %c0_i32, %c0_i32_0 : i32, i32, i32
  }
  func.func @transform_1(%arg0: i32) -> (i32, i32) {
    %c0_i32 = arith.constant 0 : i32
    %c0_i32_0 = arith.constant 0 : i32
    %c0_i32_1 = arith.constant 0 : i32
    return %c0_i32, %c0_i32_0 : i32, i32
  }
  func.func @transform_2(%arg0: i32) -> (i32, i32) {
    %c0_i32 = arith.constant 0 : i32
    %c0_i32_0 = arith.constant 0 : i32
    %c0_i32_1 = arith.constant 0 : i32
    return %c0_i32, %c0_i32_0 : i32, i32
  }
  func.func @transform_3(%arg0: i32) -> (i32, i32) {
    %c0_i32 = arith.constant 0 : i32
    %c0_i32_0 = arith.constant 0 : i32
    %c0_i32_1 = arith.constant 0 : i32
    return %c0_i32, %c0_i32_0 : i32, i32
  }
  func.func @transform_4(%arg0: i32) -> i32 {
    %c0_i32 = arith.constant 0 : i32
    %c0_i32_0 = arith.constant 0 : i32
    return %c0_i32 : i32
  }
  func.func @transform_5(%arg0: i32) -> (i32, i32) {
    %c0_i32 = arith.constant 0 : i32
    %c0_i32_0 = arith.constant 0 : i32
    return %arg0, %c0_i32 : i32, i32
  }
}

</mosaic_0001>

<llo_original>
// kernel: tpu_custom_call.1
$region0: #{tpu_custom_call.1}
  #allocation0 [shape = 'u32[]', space=smem, size = 0x4, offset = 0x4, fixed_abs, tag = 'smem constant byte address 0x4 - core index']
  #allocation1 [shape = 'u32[144,128]{1,0:T(1,128)}', space=vmem, size = 0x12000, scoped, tag = 'internal scratch']
  #allocation2 [shape = 'f32[1]{0:T(128)S(6)}', space=smem, size = 0x200, scoped, tag = 'scoped memory for tpu_custom_call.1']
  %s0 = inlined_call_operand.vmem [shape: f32[48,8,32], index: 0, kind: input, shape index: {}]
  %s1 = inlined_call_operand.vmem [shape: f32[32,32], index: 1, kind: input, shape index: {}]
  %s2 = inlined_call_operand.vmem [shape: f32[1,32], index: 2, kind: input, shape index: {}]
  %s3 = inlined_call_operand.vmem [shape: f32[1,32], index: 3, kind: input, shape index: {}]
  %s4 = inlined_call_operand.<no memory space> [shape: f32[1], index: 4, kind: input, shape index: {}]
  %s5 = inlined_call_operand.vmem [shape: f32[48,32], index: 5, kind: output, shape index: {}]
  %s6 = sld [smem:[#allocation0]]
  $region53: #{tpu_custom_call.1} parent=0
    _
  %s8 = ssub.s32 1, %s6
  %s9 = scalar_select 0, %s8, %s6
  %10 = sst [smem:[#allocation2]] %s4
  loop: start=0, step=1, limit=4
  $region2: #{tpu_custom_call.1} parent=0 // loop_pre_header
    _
  $region3: #{tpu_custom_call.1} parent=0 // loop_header
    %s12 = sphi 0, %s16
    %p13 = scmp.ge.s32.totalorder %s12, 4
    %s22 = sphi 0, %s24
    %s25 = sphi 0, %s22
    %s26 = sphi 0, %s25
    %s42 = sphi 0, %s26
    %s46 = sphi 0, %s46
    %s48 = sphi 0, %s46
    %s49 = sphi 0, %s48
    %s63 = sphi 0, %s49
    %s67 = sphi 0, %s67
    %s69 = sphi 0, %s67
    %s70 = sphi 0, %s69
    %s84 = sphi 0, %s70
    %s88 = sphi 0, %s88
    %s90 = sphi 0, %s88
    %s91 = sphi 0, %s90
    %s105 = sphi 0, %s91
    %s109 = sphi 0, %s109
    %s111 = sphi 0, %s109
    %s112 = sphi 0, %s111
    %s126 = sphi 0, %s112
    %s132 = sphi 0, %s134
    %s135 = sphi 0, %s132
    %s136 = sphi 0, %s135
    %s152 = sphi 0, %s136
  $region4: #{tpu_custom_call.1} parent=0 // loop_header_branch
    %15 = sbr.rel (%p13) target = $region8
  $region5: #{tpu_custom_call.1} parent=0 // loop_body
    %s17 = ssub.s32 %s12, 1
    %s18 = ssub.s32 %s12, 2
    %s19 = sadd.s32 %s12, 1
    %s20 = ssub.s32 %s12, %s19
    %p21 = scmp.eq.s32.totalorder %s20, 0
    %s23 = sadd.s32 %s22, 1
    %s24 = scalar_select %p21, %s22, %s23
    %p27 = pneg %p21
    %p28 = scmp.eq.s32.totalorder %s12, 1
    %p29 = por %p27, %p28
    %p30 = scmp.ne.s32.totalorder %s22, %s25
    %p31 = scmp.eq.s32.totalorder %s12, 0
    %p32 = por %p30, %p31
    %p33 = scmp.ne.s32.totalorder %s22, %s25
    %p34 = scmp.eq.s32.totalorder %s17, 1
    %p35 = por %p33, %p34
    %p36 = scmp.ne.s32.totalorder %s25, %s26
    %p37 = scmp.eq.s32.totalorder %s17, 0
    %p38 = por %p36, %p37
    %p39 = scmp.ne.s32.totalorder %s25, %s26
    %p40 = scmp.eq.s32.totalorder %s18, 1
    %p41 = por %p39, %p40
    %p43 = scmp.ne.s32.totalorder %s26, %s42
    %p44 = scmp.eq.s32.totalorder %s18, 0
    %p45 = por %p43, %p44
    %s47 = sadd.s32 %s46, 1
    %p50 = scmp.eq.s32.totalorder %s12, 1
    %p51 = scmp.ne.s32.totalorder %s46, %s48
    %p52 = scmp.eq.s32.totalorder %s12, 0
    %p53 = por %p51, %p52
    %p54 = scmp.ne.s32.totalorder %s46, %s48
    %p55 = scmp.eq.s32.totalorder %s17, 1
    %p56 = por %p54, %p55
    %p57 = scmp.ne.s32.totalorder %s48, %s49
    %p58 = scmp.eq.s32.totalorder %s17, 0
    %p59 = por %p57, %p58
    %p60 = scmp.ne.s32.totalorder %s48, %s49
    %p61 = scmp.eq.s32.totalorder %s18, 1
    %p62 = por %p60, %p61
    %p64 = scmp.ne.s32.totalorder %s49, %s63
    %p65 = scmp.eq.s32.totalorder %s18, 0
    %p66 = por %p64, %p65
    %s68 = sadd.s32 %s67, 1
    %p71 = scmp.eq.s32.totalorder %s12, 1
    %p72 = scmp.ne.s32.totalorder %s67, %s69
    %p73 = scmp.eq.s32.totalorder %s12, 0
    %p74 = por %p72, %p73
    %p75 = scmp.ne.s32.totalorder %s67, %s69
    %p76 = scmp.eq.s32.totalorder %s17, 1
    %p77 = por %p75, %p76
    %p78 = scmp.ne.s32.totalorder %s69, %s70
    %p79 = scmp.eq.s32.totalorder %s17, 0
    %p80 = por %p78, %p79
    %p81 = scmp.ne.s32.totalorder %s69, %s70
    %p82 = scmp.eq.s32.totalorder %s18, 1
    %p83 = por %p81, %p82
    %p85 = scmp.ne.s32.totalorder %s70, %s84
    %p86 = scmp.eq.s32.totalorder %s18, 0
    %p87 = por %p85, %p86
    %s89 = sadd.s32 %s88, 1
    %p92 = scmp.eq.s32.totalorder %s12, 1
    %p93 = scmp.ne.s32.totalorder %s88, %s90
    %p94 = scmp.eq.s32.totalorder %s12, 0
    %p95 = por %p93, %p94
    %p96 = scmp.ne.s32.totalorder %s88, %s90
    %p97 = scmp.eq.s32.totalorder %s17, 1
    %p98 = por %p96, %p97
    %p99 = scmp.ne.s32.totalorder %s90, %s91
    %p100 = scmp.eq.s32.totalorder %s17, 0
    %p101 = por %p99, %p100
    %p102 = scmp.ne.s32.totalorder %s90, %s91
    %p103 = scmp.eq.s32.totalorder %s18, 1
    %p104 = por %p102, %p103
    %p106 = scmp.ne.s32.totalorder %s91, %s105
    %p107 = scmp.eq.s32.totalorder %s18, 0
    %p108 = por %p106, %p107
    %s110 = sadd.s32 %s109, 1
    %p113 = scmp.eq.s32.totalorder %s12, 1
    %p114 = scmp.ne.s32.totalorder %s109, %s111
    %p115 = scmp.eq.s32.totalorder %s12, 0
    %p116 = por %p114, %p115
    %p117 = scmp.ne.s32.totalorder %s109, %s111
    %p118 = scmp.eq.s32.totalorder %s17, 1
    %p119 = por %p117, %p118
    %p120 = scmp.ne.s32.totalorder %s111, %s112
    %p121 = scmp.eq.s32.totalorder %s17, 0
    %p122 = por %p120, %p121
    %p123 = scmp.ne.s32.totalorder %s111, %s112
    %p124 = scmp.eq.s32.totalorder %s18, 1
    %p125 = por %p123, %p124
    %p127 = scmp.ne.s32.totalorder %s112, %s126
    %p128 = scmp.eq.s32.totalorder %s18, 0
    %p129 = por %p127, %p128
    %s130 = ssub.s32 %s12, %s19
    %p131 = scmp.eq.s32.totalorder %s130, 0
    %s133 = sadd.s32 %s132, 1
    %s134 = scalar_select %p131, %s132, %s133
    %p137 = pneg %p131
    %p138 = scmp.eq.s32.totalorder %s12, 1
    %p139 = por %p137, %p138
    %p140 = scmp.ne.s32.totalorder %s132, %s135
    %p141 = scmp.eq.s32.totalorder %s12, 0
    %p142 = por %p140, %p141
    %p143 = scmp.ne.s32.totalorder %s132, %s135
    %p144 = scmp.eq.s32.totalorder %s17, 1
    %p145 = por %p143, %p144
    %p146 = scmp.ne.s32.totalorder %s135, %s136
    %p147 = scmp.eq.s32.totalorder %s17, 0
    %p148 = por %p146, %p147
    %p149 = scmp.ne.s32.totalorder %s135, %s136
    %p150 = scmp.eq.s32.totalorder %s18, 1
    %p151 = por %p149, %p150
    %p153 = scmp.ne.s32.totalorder %s136, %s152
    %p154 = scmp.eq.s32.totalorder %s18, 0
    %p155 = por %p153, %p154
    %p156 = scmp.le.s32.totalorder 1, %s12
    %p157 = scmp.lt.s32.totalorder %s12, 3
    %p158 = pnand %p156, %p157
    %p159 = pneg %p158
    // Predicated region
    $region9: #{tpu_custom_call.1} parent=5 // pred_check
      _
    $region10: #{tpu_custom_call.1} parent=5 // pred_check_branch
      %161 = sbr.rel (%p158) target = $region12
    $region11: #{tpu_custom_call.1} parent=5 // pred_region
      %s162 = ssub.s32 %s12, 1
      // Predicated region
      $region13: #{tpu_custom_call.1} parent=11 // pred_check
        %p163 = pneg %p59
      $region14: #{tpu_custom_call.1} parent=11 // pred_check_branch
        %165 = sbr.rel (%p163) target = $region16
      $region15: #{tpu_custom_call.1} parent=11 // pred_region
        _
      $region16: #{tpu_custom_call.1} parent=11 // pred_fallthru
        _
      // Predicated region
      $region17: #{tpu_custom_call.1} parent=11 // pred_check
        %p166 = pneg %p80
      $region18: #{tpu_custom_call.1} parent=11 // pred_check_branch
        %168 = sbr.rel (%p166) target = $region20
      $region19: #{tpu_custom_call.1} parent=11 // pred_region
        _
      $region20: #{tpu_custom_call.1} parent=11 // pred_fallthru
        _
      // Predicated region
      $region21: #{tpu_custom_call.1} parent=11 // pred_check
        %p169 = pneg %p101
      $region22: #{tpu_custom_call.1} parent=11 // pred_check_branch
        %171 = sbr.rel (%p169) target = $region24
      $region23: #{tpu_custom_call.1} parent=11 // pred_region
        _
      $region24: #{tpu_custom_call.1} parent=11 // pred_fallthru
        _
      // Predicated region
      $region25: #{tpu_custom_call.1} parent=11 // pred_check
        %p172 = pneg %p122
      $region26: #{tpu_custom_call.1} parent=11 // pred_check_branch
        %174 = sbr.rel (%p172) target = $region28
      $region27: #{tpu_custom_call.1} parent=11 // pred_region
        _
      $region28: #{tpu_custom_call.1} parent=11 // pred_fallthru
        _
    $region12: #{tpu_custom_call.1} parent=5 // pred_fallthru
      _
    %p175 = scmp.lt.s32.totalorder %s12, 2
    // Predicated region
    $region29: #{tpu_custom_call.1} parent=5 // pred_check
      %p176 = pneg %p175
    $region30: #{tpu_custom_call.1} parent=5 // pred_check_branch
      %178 = sbr.rel (%p176) target = $region32
    $region31: #{tpu_custom_call.1} parent=5 // pred_region
      // Predicated region
      $region33: #{tpu_custom_call.1} parent=31 // pred_check
        %p179 = pneg %p32
      $region34: #{tpu_custom_call.1} parent=31 // pred_check_branch
        %181 = sbr.rel (%p179) target = $region36
      $region35: #{tpu_custom_call.1} parent=31 // pred_region
        %s182 = smul.u32 24, %s12
        %p183 = scmp.lt.s32.totalorder %s182, 47
        %s184 = scalar_select %p183, %s182, 47
        %s185 = smul.addr %s184, 8
        %s186 = scalar_lea.vmem %s0, %s185
        %s187 = smul.u32 24, %s12
      $region36: #{tpu_custom_call.1} parent=31 // pred_fallthru
        _
    $region32: #{tpu_custom_call.1} parent=5 // pred_fallthru
      _
    %p188 = scmp.le.s32.totalorder 1, %s12
    %p189 = scmp.lt.s32.totalorder %s12, 3
    %p190 = pnand %p188, %p189
    %p191 = pneg %p190
    // Predicated region
    $region37: #{tpu_custom_call.1} parent=5 // pred_check
      _
    $region38: #{tpu_custom_call.1} parent=5 // pred_check_branch
      %193 = sbr.rel (%p190) target = $region40
    $region39: #{tpu_custom_call.1} parent=5 // pred_region
      %s194 = ssub.s32 %s12, 1
      %s195 = smul.u32 24, %s17
      %p196 = scmp.lt.s32.totalorder %s195, 47
      %s197 = scalar_select %p196, %s195, 47
      %s198 = smul.addr %s197, 8
      %s199 = scalar_lea.vmem %s0, %s198
      %p200 = pneg %p38
      %p201 = pneg %p35
      %p202 = pneg %p59
      %p203 = pneg %p56
      %p204 = pneg %p80
      %p205 = pneg %p77
      %p206 = pneg %p101
      %p207 = pneg %p98
      %p208 = pneg %p122
      %p209 = pneg %p119
      %p210 = pneg %p148
      %p211 = pneg %p145
      %s212 = smul.u32 3, %s17
      %p213 = scmp.lt.s32.totalorder %s212, 5
      %s214 = scalar_select %p213, %s212, 5
      %s215 = smul.addr %s214, 8
      %s216 = scalar_lea.vmem %s5, %s215
      %s217 = smul.u32 24, %s17
      %p218 = scmp.lt.s32.totalorder %s217, 47
      %s219 = scalar_select %p218, %s217, 47
      %s220 = smul.addr %s219, 8
      %s221 = scalar_lea.vmem %s0, %s220
      %s222 = smul.u32 24, %s17
      %s223 = smul.u32 3, %s17
      %p224 = scmp.lt.s32.totalorder %s223, 5
      %s225 = scalar_select %p224, %s223, 5
      %s226 = smul.addr %s225, 8
      %s227 = scalar_lea.vmem %s5, %s226
      %s228 = smul.u32 3, %s17
      %v229 = vld [vmem:[%s221] sm:$0xff]
      %v230 = vld [vmem:[%s221 + $0x8] sm:$0xff]
      %v231 = vld [vmem:[%s221 + $0x10] sm:$0xff]
      %v232 = vld [vmem:[%s221 + $0x18] sm:$0xff]
      %v233 = vld [vmem:[%s221 + $0x20] sm:$0xff]
      %v234 = vld [vmem:[%s221 + $0x28] sm:$0xff]
      %v235 = vld [vmem:[%s221 + $0x30] sm:$0xff]
      %v236 = vld [vmem:[%s221 + $0x38] sm:$0xff]
      %v237 = vld [vmem:[%s221 + $0x40] sm:$0xff]
      %v238 = vld [vmem:[%s221 + $0x48] sm:$0xff]
      %v239 = vld [vmem:[%s221 + $0x50] sm:$0xff]
      %v240 = vld [vmem:[%s221 + $0x58] sm:$0xff]
      %v241 = vld [vmem:[%s221 + $0x60] sm:$0xff]
      %v242 = vld [vmem:[%s221 + $0x68] sm:$0xff]
      %v243 = vld [vmem:[%s221 + $0x70] sm:$0xff]
      %v244 = vld [vmem:[%s221 + $0x78] sm:$0xff]
      %v245 = vld [vmem:[%s221 + $0x80] sm:$0xff]
      %v246 = vld [vmem:[%s221 + $0x88] sm:$0xff]
      %v247 = vld [vmem:[%s221 + $0x90] sm:$0xff]
      %v248 = vld [vmem:[%s221 + $0x98] sm:$0xff]
      %v249 = vld [vmem:[%s221 + $0xa0] sm:$0xff]
      %v250 = vld [vmem:[%s221 + $0xa8] sm:$0xff]
      %v251 = vld [vmem:[%s221 + $0xb0] sm:$0xff]
      %v252 = vld [vmem:[%s221 + $0xb8] sm:$0xff]
      %v253 = vld [vmem:[%s1] sm:$0xff]
      %v254 = vld [vmem:[%s1 + $0x8] sm:$0xff]
      %v255 = vld [vmem:[%s1 + $0x10] sm:$0xff]
      %v256 = vld [vmem:[%s1 + $0x18] sm:$0xff]
      %v257 = vld [vmem:[%s2] sm:$0x1]
      %v259 = vlaneseq
      %v260 = vshrl.u32 %v259, 7
      %v261 = vsub.s32 0, %v260
      %v262 = vrot.slane %v257, %v261
      %vm264 = vcmask 261120
      %v266 = vsel %vm264, %v229, 0
      %v269 = vsel %vm264, %v230, 0
      %v272 = vsel %vm264, %v231, 0
      %v275 = vsel %vm264, %v232, 0
      %v278 = vsel %vm264, %v233, 0
      %v281 = vsel %vm264, %v234, 0
      %v284 = vsel %vm264, %v235, 0
      %v287 = vsel %vm264, %v236, 0
      %v290 = vsel %vm264, %v237, 0
      %v293 = vsel %vm264, %v238, 0
      %v296 = vsel %vm264, %v239, 0
      %v299 = vsel %vm264, %v240, 0
      %v302 = vsel %vm264, %v241, 0
      %v305 = vsel %vm264, %v242, 0
      %v308 = vsel %vm264, %v243, 0
      %v311 = vsel %vm264, %v244, 0
      %v314 = vsel %vm264, %v245, 0
      %v317 = vsel %vm264, %v246, 0
      %v320 = vsel %vm264, %v247, 0
      %v323 = vsel %vm264, %v248, 0
      %v326 = vsel %vm264, %v249, 0
      %v329 = vsel %vm264, %v250, 0
      %v332 = vsel %vm264, %v251, 0
      %v335 = vsel %vm264, %v252, 0
      %337 = vmatprep.subr.mxu0 0.0
      %338 = vmatpush1.msra.mxu0 %v253
      %339 = vmatprep.subr.mxu0 0.0
      %340 = vmatpush1.msra.mxu0 %v254
      %341 = vmatprep.subr.mxu0 0.0
      %342 = vmatpush1.msra.mxu0 %v255
      %343 = vmatprep.subr.mxu0 0.0
      %344 = vmatpush1.msra.mxu0 %v256
      %345 = vmatprep.subr.mxu0 0.0
      %346 = vmatpush1.msra.mxu0 0.0
      %347 = vmatprep.subr.mxu0 0.0
      %348 = vmatpush1.msra.mxu0 0.0
      %349 = vmatprep.subr.mxu0 0.0
      %350 = vmatpush1.msra.mxu0 0.0
      %351 = vmatprep.subr.mxu0 0.0
      %352 = vmatpush1.msra.mxu0 0.0
      %353 = vmatprep.subr.mxu0 0.0
      %354 = vmatpush1.msra.mxu0 0.0
      %355 = vmatprep.subr.mxu0 0.0
      %356 = vmatpush1.msra.mxu0 0.0
      %357 = vmatprep.subr.mxu0 0.0
      %358 = vmatpush1.msra.mxu0 0.0
      %359 = vmatprep.subr.mxu0 0.0
      %360 = vmatpush1.msra.mxu0 0.0
      %361 = vmatprep.subr.mxu0 0.0
      %362 = vmatpush1.msra.mxu0 0.0
      %363 = vmatprep.subr.mxu0 0.0
      %364 = vmatpush1.msra.mxu0 0.0
      %365 = vmatprep.subr.mxu0 0.0
      %366 = vmatpush1.msra.mxu0 0.0
      %367 = vmatprep.subr.mxu0 0.0
      %368 = vmatpush1.msra.mxu0 0.0
      %369 = vmatprep.subr.mxu0 0.0
      %370 = vmatpush1.msra.mxu0 0.0
      %371 = vmatprep.subr.mxu0 0.0
      %372 = vmatpush1.msra.mxu0 0.0
      %373 = vmatprep.subr.mxu0 0.0
      %374 = vmatpush1.msra.mxu0 0.0
      %375 = vmatprep.subr.mxu0 0.0
      %376 = vmatpush1.msra.mxu0 0.0
      %377 = vmatprep.subr.mxu0 0.0
      %378 = vmatpush1.msra.mxu0 0.0
      %379 = vmatprep.subr.mxu0 0.0
      %380 = vmatpush1.msra.mxu0 0.0
      %381 = vmatprep.subr.mxu0 0.0
      %382 = vmatpush1.msra.mxu0 0.0
      %383 = vmatprep.subr.mxu0 0.0
      %384 = vmatpush1.msra.mxu0 0.0
      %385 = vmatprep.subr.mxu0 0.0
      %386 = vmatpush1.msra.mxu0 0.0
      %387 = vmatprep.subr.mxu0 0.0
      %388 = vmatpush1.msra.mxu0 0.0
      %389 = vmatprep.subr.mxu0 0.0
      %390 = vmatpush1.msra.mxu0 0.0
      %391 = vmatprep.subr.mxu0 0.0
      %392 = vmatpush1.msra.mxu0 0.0
      %393 = vmatprep.subr.mxu0 0.0
      %394 = vmatpush1.msra.mxu0 0.0
      %395 = vmatprep.subr.mxu0 0.0
      %396 = vmatpush1.msra.mxu0 0.0
      %397 = vmatprep.subr.mxu0 0.0
      %398 = vmatpush1.msra.mxu0 0.0
      %399 = vmatprep.subr.mxu0 0.0
      %400 = vmatpush1.msra.mxu0 0.0
      %401 = vmatprep.mubr.f32.mxu0 0.0
      %402 = vmatmul.mubr.f32.gmra.mrb[0].mxu0 %v266
      %v403 = vpop.f32.mrb[0].mxu0
      %v404 = vadd.f32 %v262, %v403
      %v405 = vpop.f32.mrb[0].mxu0
      %406 = vmatprep.mubr.f32.mxu0 0.0
      %407 = vmatmul.mubr.f32.gmra.mrb[0].mxu0 %v269
      %v408 = vpop.f32.mrb[0].mxu0
      %v409 = vadd.f32 %v262, %v408
      %v410 = vpop.f32.mrb[0].mxu0
      %411 = vmatprep.mubr.f32.mxu0 0.0
      %412 = vmatmul.mubr.f32.gmra.mrb[0].mxu0 %v272
      %v413 = vpop.f32.mrb[0].mxu0
      %v414 = vadd.f32 %v262, %v413
      %v415 = vpop.f32.mrb[0].mxu0
      %416 = vmatprep.mubr.f32.mxu0 0.0
      %417 = vmatmul.mubr.f32.gmra.mrb[0].mxu0 %v275
      %v418 = vpop.f32.mrb[0].mxu0
      %v419 = vadd.f32 %v262, %v418
      %v420 = vpop.f32.mrb[0].mxu0
      %421 = vmatprep.mubr.f32.mxu0 0.0
      %422 = vmatmul.mubr.f32.gmra.mrb[0].mxu0 %v278
      %v423 = vpop.f32.mrb[0].mxu0
      %v424 = vadd.f32 %v262, %v423
      %v425 = vpop.f32.mrb[0].mxu0
      %426 = vmatprep.mubr.f32.mxu0 0.0
      %427 = vmatmul.mubr.f32.gmra.mrb[0].mxu0 %v281
      %v428 = vpop.f32.mrb[0].mxu0
      %v429 = vadd.f32 %v262, %v428
      %v430 = vpop.f32.mrb[0].mxu0
      %431 = vmatprep.mubr.f32.mxu0 0.0
      %432 = vmatmul.mubr.f32.gmra.mrb[0].mxu0 %v284
      %v433 = vpop.f32.mrb[0].mxu0
      %v434 = vadd.f32 %v262, %v433
      %v435 = vpop.f32.mrb[0].mxu0
      %436 = vmatprep.mubr.f32.mxu0 0.0
      %437 = vmatmul.mubr.f32.gmra.mrb[0].mxu0 %v287
      %v438 = vpop.f32.mrb[0].mxu0
      %v439 = vadd.f32 %v262, %v438
      %v440 = vpop.f32.mrb[0].mxu0
      %441 = vmatprep.mubr.f32.mxu0 0.0
      %442 = vmatmul.mubr.f32.gmra.mrb[0].mxu0 %v290
      %v443 = vpop.f32.mrb[0].mxu0
      %v444 = vadd.f32 %v262, %v443
      %v445 = vpop.f32.mrb[0].mxu0
      %446 = vmatprep.mubr.f32.mxu0 0.0
      %447 = vmatmul.mubr.f32.gmra.mrb[0].mxu0 %v293
      %v448 = vpop.f32.mrb[0].mxu0
      %v449 = vadd.f32 %v262, %v448
      %v450 = vpop.f32.mrb[0].mxu0
      %451 = vmatprep.mubr.f32.mxu0 0.0
      %452 = vmatmul.mubr.f32.gmra.mrb[0].mxu0 %v296
      %v453 = vpop.f32.mrb[0].mxu0
      %v454 = vadd.f32 %v262, %v453
      %v455 = vpop.f32.mrb[0].mxu0
      %456 = vmatprep.mubr.f32.mxu0 0.0
      %457 = vmatmul.mubr.f32.gmra.mrb[0].mxu0 %v299
      %v458 = vpop.f32.mrb[0].mxu0
      %v459 = vadd.f32 %v262, %v458
      %v460 = vpop.f32.mrb[0].mxu0
      %461 = vmatprep.mubr.f32.mxu0 0.0
      %462 = vmatmul.mubr.f32.gmra.mrb[0].mxu0 %v302
      %v463 = vpop.f32.mrb[0].mxu0
      %v464 = vadd.f32 %v262, %v463
      %v465 = vpop.f32.mrb[0].mxu0
      %466 = vmatprep.mubr.f32.mxu0 0.0
      %467 = vmatmul.mubr.f32.gmra.mrb[0].mxu0 %v305
      %v468 = vpop.f32.mrb[0].mxu0
      %v469 = vadd.f32 %v262, %v468
      %v470 = vpop.f32.mrb[0].mxu0
      %471 = vmatprep.mubr.f32.mxu0 0.0
      %472 = vmatmul.mubr.f32.gmra.mrb[0].mxu0 %v308
      %v473 = vpop.f32.mrb[0].mxu0
      %v474 = vadd.f32 %v262, %v473
      %v475 = vpop.f32.mrb[0].mxu0
      %476 = vmatprep.mubr.f32.mxu0 0.0
      %477 = vmatmul.mubr.f32.gmra.mrb[0].mxu0 %v311
      %v478 = vpop.f32.mrb[0].mxu0
      %v479 = vadd.f32 %v262, %v478
      %v480 = vpop.f32.mrb[0].mxu0
      %481 = vmatprep.mubr.f32.mxu0 0.0
      %482 = vmatmul.mubr.f32.gmra.mrb[0].mxu0 %v314
      %v483 = vpop.f32.mrb[0].mxu0
      %v484 = vadd.f32 %v262, %v483
      %v485 = vpop.f32.mrb[0].mxu0
      %486 = vmatprep.mubr.f32.mxu0 0.0
      %487 = vmatmul.mubr.f32.gmra.mrb[0].mxu0 %v317
      %v488 = vpop.f32.mrb[0].mxu0
      %v489 = vadd.f32 %v262, %v488
      %v490 = vpop.f32.mrb[0].mxu0
      %491 = vmatprep.mubr.f32.mxu0 0.0
      %492 = vmatmul.mubr.f32.gmra.mrb[0].mxu0 %v320
      %v493 = vpop.f32.mrb[0].mxu0
      %v494 = vadd.f32 %v262, %v493
      %v495 = vpop.f32.mrb[0].mxu0
      %496 = vmatprep.mubr.f32.mxu0 0.0
      %497 = vmatmul.mubr.f32.gmra.mrb[0].mxu0 %v323
      %v498 = vpop.f32.mrb[0].mxu0
      %v499 = vadd.f32 %v262, %v498
      %v500 = vpop.f32.mrb[0].mxu0
      %501 = vmatprep.mubr.f32.mxu0 0.0
      %502 = vmatmul.mubr.f32.gmra.mrb[0].mxu0 %v326
      %v503 = vpop.f32.mrb[0].mxu0
      %v504 = vadd.f32 %v262, %v503
      %v505 = vpop.f32.mrb[0].mxu0
      %506 = vmatprep.mubr.f32.mxu0 0.0
      %507 = vmatmul.mubr.f32.gmra.mrb[0].mxu0 %v329
      %v508 = vpop.f32.mrb[0].mxu0
      %v509 = vadd.f32 %v262, %v508
      %v510 = vpop.f32.mrb[0].mxu0
      %511 = vmatprep.mubr.f32.mxu0 0.0
      %512 = vmatmul.mubr.f32.gmra.mrb[0].mxu0 %v332
      %v513 = vpop.f32.mrb[0].mxu0
      %v514 = vadd.f32 %v262, %v513
      %v515 = vpop.f32.mrb[0].mxu0
      %516 = vmatprep.mubr.f32.mxu0 0.0
      %517 = vmatmul.mubr.f32.gmra.mrb[0].mxu0 %v335
      %v518 = vpop.f32.mrb[0].mxu0
      %v519 = vadd.f32 %v262, %v518
      %v520 = vpop.f32.mrb[0].mxu0
      %521 = vdwg.mxu0
      %v522 = vtanh.pop %v404
      %v523 = vtanh.pop %v409
      %v524 = vtanh.pop %v414
      %v525 = vtanh.pop %v419
      %v526 = vtanh.pop %v424
      %v527 = vtanh.pop %v429
      %v528 = vtanh.pop %v434
      %v529 = vtanh.pop %v439
      %v530 = vtanh.pop %v444
      %v531 = vtanh.pop %v449
      %v532 = vtanh.pop %v454
      %v533 = vtanh.pop %v459
      %v534 = vtanh.pop %v464
      %v535 = vtanh.pop %v469
      %v536 = vtanh.pop %v474
      %v537 = vtanh.pop %v479
      %v538 = vtanh.pop %v484
      %v539 = vtanh.pop %v489
      %v540 = vtanh.pop %v494
      %v541 = vtanh.pop %v499
      %v542 = vtanh.pop %v504
      %v543 = vtanh.pop %v509
      %v544 = vtanh.pop %v514
      %v545 = vtanh.pop %v519
      %v546 = vld [vmem:[%s3] sm:$0x1]
      %v548 = vlaneseq
      %v549 = vshrl.u32 %v548, 7
      %v550 = vsub.s32 0, %v549
      %v551 = vrot.slane %v546, %v550
      %v553 = vmul.f32 %v522, %v551
      %v554 = vmul.f32 %v523, %v551
      %v555 = vmul.f32 %v524, %v551
      %v556 = vmul.f32 %v525, %v551
      %v557 = vmul.f32 %v526, %v551
      %v558 = vmul.f32 %v527, %v551
      %v559 = vmul.f32 %v528, %v551
      %v560 = vmul.f32 %v529, %v551
      %v561 = vmul.f32 %v530, %v551
      %v562 = vmul.f32 %v531, %v551
      %v563 = vmul.f32 %v532, %v551
      %v564 = vmul.f32 %v533, %v551
      %v565 = vmul.f32 %v534, %v551
      %v566 = vmul.f32 %v535, %v551
      %v567 = vmul.f32 %v536, %v551
      %v568 = vmul.f32 %v537, %v551
      %v569 = vmul.f32 %v538, %v551
      %v570 = vmul.f32 %v539, %v551
      %v571 = vmul.f32 %v540, %v551
      %v572 = vmul.f32 %v541, %v551
      %v573 = vmul.f32 %v542, %v551
      %v574 = vmul.f32 %v543, %v551
      %v575 = vmul.f32 %v544, %v551
      %v576 = vmul.f32 %v545, %v551
      %v577 = vsel %vm264, %v553, 0.0
      %578 = vadd.xlane.f32.xlu0 %v577
      %v579 = vpop.xlane.xlu0 %578
      %v580 = vsel %vm264, %v554, 0.0
      %581 = vadd.xlane.f32.xlu0 %v580
      %v582 = vpop.xlane.xlu0 %581
      %v583 = vsel %vm264, %v555, 0.0
      %584 = vadd.xlane.f32.xlu0 %v583
      %v585 = vpop.xlane.xlu0 %584
      %v586 = vsel %vm264, %v556, 0.0
      %587 = vadd.xlane.f32.xlu0 %v586
      %v588 = vpop.xlane.xlu0 %587
      %v589 = vsel %vm264, %v557, 0.0
      %590 = vadd.xlane.f32.xlu0 %v589
      %v591 = vpop.xlane.xlu0 %590
      %v592 = vsel %vm264, %v558, 0.0
      %593 = vadd.xlane.f32.xlu0 %v592
      %v594 = vpop.xlane.xlu0 %593
      %v595 = vsel %vm264, %v559, 0.0
      %596 = vadd.xlane.f32.xlu0 %v595
      %v597 = vpop.xlane.xlu0 %596
      %v598 = vsel %vm264, %v560, 0.0
      %599 = vadd.xlane.f32.xlu0 %v598
      %v600 = vpop.xlane.xlu0 %599
      %v601 = vsel %vm264, %v561, 0.0
      %602 = vadd.xlane.f32.xlu0 %v601
      %v603 = vpop.xlane.xlu0 %602
      %v604 = vsel %vm264, %v562, 0.0
      %605 = vadd.xlane.f32.xlu0 %v604
      %v606 = vpop.xlane.xlu0 %605
      %v607 = vsel %vm264, %v563, 0.0
      %608 = vadd.xlane.f32.xlu0 %v607
      %v609 = vpop.xlane.xlu0 %608
      %v610 = vsel %vm264, %v564, 0.0
      %611 = vadd.xlane.f32.xlu0 %v610
      %v612 = vpop.xlane.xlu0 %611
      %v613 = vsel %vm264, %v565, 0.0
      %614 = vadd.xlane.f32.xlu0 %v613
      %v615 = vpop.xlane.xlu0 %614
      %v616 = vsel %vm264, %v566, 0.0
      %617 = vadd.xlane.f32.xlu0 %v616
      %v618 = vpop.xlane.xlu0 %617
      %v619 = vsel %vm264, %v567, 0.0
      %620 = vadd.xlane.f32.xlu0 %v619
      %v621 = vpop.xlane.xlu0 %620
      %v622 = vsel %vm264, %v568, 0.0
      %623 = vadd.xlane.f32.xlu0 %v622
      %v624 = vpop.xlane.xlu0 %623
      %v625 = vsel %vm264, %v569, 0.0
      %626 = vadd.xlane.f32.xlu0 %v625
      %v627 = vpop.xlane.xlu0 %626
      %v628 = vsel %vm264, %v570, 0.0
      %629 = vadd.xlane.f32.xlu0 %v628
      %v630 = vpop.xlane.xlu0 %629
      %v631 = vsel %vm264, %v571, 0.0
      %632 = vadd.xlane.f32.xlu0 %v631
      %v633 = vpop.xlane.xlu0 %632
      %v634 = vsel %vm264, %v572, 0.0
      %635 = vadd.xlane.f32.xlu0 %v634
      %v636 = vpop.xlane.xlu0 %635
      %v637 = vsel %vm264, %v573, 0.0
      %638 = vadd.xlane.f32.xlu0 %v637
      %v639 = vpop.xlane.xlu0 %638
      %v640 = vsel %vm264, %v574, 0.0
      %641 = vadd.xlane.f32.xlu0 %v640
      %v642 = vpop.xlane.xlu0 %641
      %v643 = vsel %vm264, %v575, 0.0
      %644 = vadd.xlane.f32.xlu0 %v643
      %v645 = vpop.xlane.xlu0 %644
      %v646 = vsel %vm264, %v576, 0.0
      %647 = vadd.xlane.f32.xlu0 %v646
      %v648 = vpop.xlane.xlu0 %647
      %s649 = sld [smem:[#allocation2]]
      %v650 = vstv %s649
      %v651 = vadd.f32 %v579, %v650
      %v652 = vadd.f32 %v582, %v650
      %v653 = vadd.f32 %v585, %v650
      %v654 = vadd.f32 %v588, %v650
      %v655 = vadd.f32 %v591, %v650
      %v656 = vadd.f32 %v594, %v650
      %v657 = vadd.f32 %v597, %v650
      %v658 = vadd.f32 %v600, %v650
      %v659 = vadd.f32 %v603, %v650
      %v660 = vadd.f32 %v606, %v650
      %v661 = vadd.f32 %v609, %v650
      %v662 = vadd.f32 %v612, %v650
      %v663 = vadd.f32 %v615, %v650
      %v664 = vadd.f32 %v618, %v650
      %v665 = vadd.f32 %v621, %v650
      %v666 = vadd.f32 %v624, %v650
      %v667 = vadd.f32 %v627, %v650
      %v668 = vadd.f32 %v630, %v650
      %v669 = vadd.f32 %v633, %v650
      %v670 = vadd.f32 %v636, %v650
      %v671 = vadd.f32 %v639, %v650
      %v672 = vadd.f32 %v642, %v650
      %v673 = vadd.f32 %v645, %v650
      %v674 = vadd.f32 %v648, %v650
      %v699 = vlaneseq
      %v700 = vand.u32 %v699, 127
      %v701 = vlaneseq
      %v702 = vshrl.u32 %v701, 7
      %v703 = vsub.s32 %v700, %v702
      %v704 = vrot.slane %v651, %v703
      %v705 = vlaneseq
      %v706 = vshrl.u32 %v705, 7
      %v707 = vsub.s32 %v700, %v706
      %v708 = vrot.slane %v652, %v707
      %v709 = vlaneseq
      %v710 = vshrl.u32 %v709, 7
      %v711 = vsub.s32 %v700, %v710
      %v712 = vrot.slane %v653, %v711
      %v713 = vlaneseq
      %v714 = vshrl.u32 %v713, 7
      %v715 = vsub.s32 %v700, %v714
      %v716 = vrot.slane %v654, %v715
      %v717 = vlaneseq
      %v718 = vshrl.u32 %v717, 7
      %v719 = vsub.s32 %v700, %v718
      %v720 = vrot.slane %v655, %v719
      %v721 = vlaneseq
      %v722 = vshrl.u32 %v721, 7
      %v723 = vsub.s32 %v700, %v722
      %v724 = vrot.slane %v656, %v723
      %v725 = vlaneseq
      %v726 = vshrl.u32 %v725, 7
      %v727 = vsub.s32 %v700, %v726
      %v728 = vrot.slane %v657, %v727
      %v729 = vlaneseq
      %v730 = vshrl.u32 %v729, 7
      %v731 = vsub.s32 %v700, %v730
      %v732 = vrot.slane %v658, %v731
      %v733 = vlaneseq
      %v734 = vshrl.u32 %v733, 7
      %v735 = vsub.s32 %v700, %v734
      %v736 = vrot.slane %v659, %v735
      %v737 = vlaneseq
      %v738 = vshrl.u32 %v737, 7
      %v739 = vsub.s32 %v700, %v738
      %v740 = vrot.slane %v660, %v739
      %v741 = vlaneseq
      %v742 = vshrl.u32 %v741, 7
      %v743 = vsub.s32 %v700, %v742
      %v744 = vrot.slane %v661, %v743
      %v745 = vlaneseq
      %v746 = vshrl.u32 %v745, 7
      %v747 = vsub.s32 %v700, %v746
      %v748 = vrot.slane %v662, %v747
      %v749 = vlaneseq
      %v750 = vshrl.u32 %v749, 7
      %v751 = vsub.s32 %v700, %v750
      %v752 = vrot.slane %v663, %v751
      %v753 = vlaneseq
      %v754 = vshrl.u32 %v753, 7
      %v755 = vsub.s32 %v700, %v754
      %v756 = vrot.slane %v664, %v755
      %v757 = vlaneseq
      %v758 = vshrl.u32 %v757, 7
      %v759 = vsub.s32 %v700, %v758
      %v760 = vrot.slane %v665, %v759
      %v761 = vlaneseq
      %v762 = vshrl.u32 %v761, 7
      %v763 = vsub.s32 %v700, %v762
      %v764 = vrot.slane %v666, %v763
      %v765 = vlaneseq
      %v766 = vshrl.u32 %v765, 7
      %v767 = vsub.s32 %v700, %v766
      %v768 = vrot.slane %v667, %v767
      %v769 = vlaneseq
      %v770 = vshrl.u32 %v769, 7
      %v771 = vsub.s32 %v700, %v770
      %v772 = vrot.slane %v668, %v771
      %v773 = vlaneseq
      %v774 = vshrl.u32 %v773, 7
      %v775 = vsub.s32 %v700, %v774
      %v776 = vrot.slane %v669, %v775
      %v777 = vlaneseq
      %v778 = vshrl.u32 %v777, 7
      %v779 = vsub.s32 %v700, %v778
      %v780 = vrot.slane %v670, %v779
      %v781 = vlaneseq
      %v782 = vshrl.u32 %v781, 7
      %v783 = vsub.s32 %v700, %v782
      %v784 = vrot.slane %v671, %v783
      %v785 = vlaneseq
      %v786 = vshrl.u32 %v785, 7
      %v787 = vsub.s32 %v700, %v786
      %v788 = vrot.slane %v672, %v787
      %v789 = vlaneseq
      %v790 = vshrl.u32 %v789, 7
      %v791 = vsub.s32 %v700, %v790
      %v792 = vrot.slane %v673, %v791
      %v793 = vlaneseq
      %v794 = vshrl.u32 %v793, 7
      %v795 = vsub.s32 %v700, %v794
      %v796 = vrot.slane %v674, %v795
      %vm797 = vcmask 1041409
      %v798 = vsel %vm797, %v708, %v704
      %vm799 = vcmask 1042434
      %v800 = vsel %vm799, %v712, %v798
      %vm801 = vcmask 1043459
      %v802 = vsel %vm801, %v716, %v800
      %vm803 = vcmask 1044484
      %v804 = vsel %vm803, %v720, %v802
      %vm805 = vcmask 1045509
      %v806 = vsel %vm805, %v724, %v804
      %vm807 = vcmask 1046534
      %v808 = vsel %vm807, %v728, %v806
      %vm809 = vcmask 1047559
      %v810 = vsel %vm809, %v732, %v808
      %v811 = vsel %vm797, %v740, %v736
      %v812 = vsel %vm799, %v744, %v811
      %v813 = vsel %vm801, %v748, %v812
      %v814 = vsel %vm803, %v752, %v813
      %v815 = vsel %vm805, %v756, %v814
      %v816 = vsel %vm807, %v760, %v815
      %v817 = vsel %vm809, %v764, %v816
      %v818 = vsel %vm797, %v772, %v768
      %v819 = vsel %vm799, %v776, %v818
      %v820 = vsel %vm801, %v780, %v819
      %v821 = vsel %vm803, %v784, %v820
      %v822 = vsel %vm805, %v788, %v821
      %v823 = vsel %vm807, %v792, %v822
      %v824 = vsel %vm809, %v796, %v823
      %vm828 = vcmask 64512
      %v829 = vsel %vm828, %v810, -inf
      %830 = vmax.xlane.f32.xlu0 %v829
      %v831 = vpop.xlane.xlu0 %830
      %v832 = vsel %vm828, %v817, -inf
      %833 = vmax.xlane.f32.xlu0 %v832
      %v834 = vpop.xlane.xlu0 %833
      %v835 = vsel %vm828, %v824, -inf
      %836 = vmax.xlane.f32.xlu0 %v835
      %v837 = vpop.xlane.xlu0 %836
      %v841 = vlaneseq
      %v842 = vshrl.u32 %v841, 7
      %v843 = vsub.s32 0, %v842
      %v844 = vrot.slane %v831, %v843
      %v845 = vlaneseq
      %v846 = vshrl.u32 %v845, 7
      %v847 = vsub.s32 1, %v846
      %v848 = vrot.slane %v831, %v847
      %v849 = vlaneseq
      %v850 = vshrl.u32 %v849, 7
      %v851 = vsub.s32 2, %v850
      %v852 = vrot.slane %v831, %v851
      %v853 = vlaneseq
      %v854 = vshrl.u32 %v853, 7
      %v855 = vsub.s32 3, %v854
      %v856 = vrot.slane %v831, %v855
      %v857 = vlaneseq
      %v858 = vshrl.u32 %v857, 7
      %v859 = vsub.s32 4, %v858
      %v860 = vrot.slane %v831, %v859
      %v861 = vlaneseq
      %v862 = vshrl.u32 %v861, 7
      %v863 = vsub.s32 5, %v862
      %v864 = vrot.slane %v831, %v863
      %v865 = vlaneseq
      %v866 = vshrl.u32 %v865, 7
      %v867 = vsub.s32 6, %v866
      %v868 = vrot.slane %v831, %v867
      %v869 = vlaneseq
      %v870 = vshrl.u32 %v869, 7
      %v871 = vsub.s32 7, %v870
      %v872 = vrot.slane %v831, %v871
      %v873 = vlaneseq
      %v874 = vshrl.u32 %v873, 7
      %v875 = vsub.s32 0, %v874
      %v876 = vrot.slane %v834, %v875
      %v877 = vlaneseq
      %v878 = vshrl.u32 %v877, 7
      %v879 = vsub.s32 1, %v878
      %v880 = vrot.slane %v834, %v879
      %v881 = vlaneseq
      %v882 = vshrl.u32 %v881, 7
      %v883 = vsub.s32 2, %v882
      %v884 = vrot.slane %v834, %v883
      %v885 = vlaneseq
      %v886 = vshrl.u32 %v885, 7
      %v887 = vsub.s32 3, %v886
      %v888 = vrot.slane %v834, %v887
      %v889 = vlaneseq
      %v890 = vshrl.u32 %v889, 7
      %v891 = vsub.s32 4, %v890
      %v892 = vrot.slane %v834, %v891
      %v893 = vlaneseq
      %v894 = vshrl.u32 %v893, 7
      %v895 = vsub.s32 5, %v894
      %v896 = vrot.slane %v834, %v895
      %v897 = vlaneseq
      %v898 = vshrl.u32 %v897, 7
      %v899 = vsub.s32 6, %v898
      %v900 = vrot.slane %v834, %v899
      %v901 = vlaneseq
      %v902 = vshrl.u32 %v901, 7
      %v903 = vsub.s32 7, %v902
      %v904 = vrot.slane %v834, %v903
      %v905 = vlaneseq
      %v906 = vshrl.u32 %v905, 7
      %v907 = vsub.s32 0, %v906
      %v908 = vrot.slane %v837, %v907
      %v909 = vlaneseq
      %v910 = vshrl.u32 %v909, 7
      %v911 = vsub.s32 1, %v910
      %v912 = vrot.slane %v837, %v911
      %v913 = vlaneseq
      %v914 = vshrl.u32 %v913, 7
      %v915 = vsub.s32 2, %v914
      %v916 = vrot.slane %v837, %v915
      %v917 = vlaneseq
      %v918 = vshrl.u32 %v917, 7
      %v919 = vsub.s32 3, %v918
      %v920 = vrot.slane %v837, %v919
      %v921 = vlaneseq
      %v922 = vshrl.u32 %v921, 7
      %v923 = vsub.s32 4, %v922
      %v924 = vrot.slane %v837, %v923
      %v925 = vlaneseq
      %v926 = vshrl.u32 %v925, 7
      %v927 = vsub.s32 5, %v926
      %v928 = vrot.slane %v837, %v927
      %v929 = vlaneseq
      %v930 = vshrl.u32 %v929, 7
      %v931 = vsub.s32 6, %v930
      %v932 = vrot.slane %v837, %v931
      %v933 = vlaneseq
      %v934 = vshrl.u32 %v933, 7
      %v935 = vsub.s32 7, %v934
      %v936 = vrot.slane %v837, %v935
      %v961 = vsub.f32 %v651, %v844
      %v962 = vsub.f32 %v652, %v848
      %v963 = vsub.f32 %v653, %v852
      %v964 = vsub.f32 %v654, %v856
      %v965 = vsub.f32 %v655, %v860
      %v966 = vsub.f32 %v656, %v864
      %v967 = vsub.f32 %v657, %v868
      %v968 = vsub.f32 %v658, %v872
      %v969 = vsub.f32 %v659, %v876
      %v970 = vsub.f32 %v660, %v880
      %v971 = vsub.f32 %v661, %v884
      %v972 = vsub.f32 %v662, %v888
      %v973 = vsub.f32 %v663, %v892
      %v974 = vsub.f32 %v664, %v896
      %v975 = vsub.f32 %v665, %v900
      %v976 = vsub.f32 %v666, %v904
      %v977 = vsub.f32 %v667, %v908
      %v978 = vsub.f32 %v668, %v912
      %v979 = vsub.f32 %v669, %v916
      %v980 = vsub.f32 %v670, %v920
      %v981 = vsub.f32 %v671, %v924
      %v982 = vsub.f32 %v672, %v928
      %v983 = vsub.f32 %v673, %v932
      %v984 = vsub.f32 %v674, %v936
      %v985 = vmul.f32 %v961, 1.442695
      %v986 = vpow.pop %v985
      %v987 = vmul.f32 %v962, 1.442695
      %v988 = vpow.pop %v987
      %v989 = vmul.f32 %v963, 1.442695
      %v990 = vpow.pop %v989
      %v991 = vmul.f32 %v964, 1.442695
      %v992 = vpow.pop %v991
      %v993 = vmul.f32 %v965, 1.442695
      %v994 = vpow.pop %v993
      %v995 = vmul.f32 %v966, 1.442695
      %v996 = vpow.pop %v995
      %v997 = vmul.f32 %v967, 1.442695
      %v998 = vpow.pop %v997
      %v999 = vmul.f32 %v968, 1.442695
      %v1000 = vpow.pop %v999
      %v1001 = vmul.f32 %v969, 1.442695
      %v1002 = vpow.pop %v1001
      %v1003 = vmul.f32 %v970, 1.442695
      %v1004 = vpow.pop %v1003
      %v1005 = vmul.f32 %v971, 1.442695
      %v1006 = vpow.pop %v1005
      %v1007 = vmul.f32 %v972, 1.442695
      %v1008 = vpow.pop %v1007
      %v1009 = vmul.f32 %v973, 1.442695
      %v1010 = vpow.pop %v1009
      %v1011 = vmul.f32 %v974, 1.442695
      %v1012 = vpow.pop %v1011
      %v1013 = vmul.f32 %v975, 1.442695
      %v1014 = vpow.pop %v1013
      %v1015 = vmul.f32 %v976, 1.442695
      %v1016 = vpow.pop %v1015
      %v1017 = vmul.f32 %v977, 1.442695
      %v1018 = vpow.pop %v1017
      %v1019 = vmul.f32 %v978, 1.442695
      %v1020 = vpow.pop %v1019
      %v1021 = vmul.f32 %v979, 1.442695
      %v1022 = vpow.pop %v1021
      %v1023 = vmul.f32 %v980, 1.442695
      %v1024 = vpow.pop %v1023
      %v1025 = vmul.f32 %v981, 1.442695
      %v1026 = vpow.pop %v1025
      %v1027 = vmul.f32 %v982, 1.442695
      %v1028 = vpow.pop %v1027
      %v1029 = vmul.f32 %v983, 1.442695
      %v1030 = vpow.pop %v1029
      %v1031 = vmul.f32 %v984, 1.442695
      %v1032 = vpow.pop %v1031
      %1057 = vset.pattern.permute.xlu0 0
      %1058 = vperm.xlu0 %1057, %v986
      %v1059 = vpop.permute.xlu0 %1058
      %1060 = vset.pattern.permute.xlu0 0
      %1061 = vperm.xlu0 %1060, %v988
      %v1062 = vpop.permute.xlu0 %1061
      %1063 = vset.pattern.permute.xlu0 0
      %1064 = vperm.xlu0 %1063, %v990
      %v1065 = vpop.permute.xlu0 %1064
      %1066 = vset.pattern.permute.xlu0 0
      %1067 = vperm.xlu0 %1066, %v992
      %v1068 = vpop.permute.xlu0 %1067
      %1069 = vset.pattern.permute.xlu0 0
      %1070 = vperm.xlu0 %1069, %v994
      %v1071 = vpop.permute.xlu0 %1070
      %1072 = vset.pattern.permute.xlu0 0
      %1073 = vperm.xlu0 %1072, %v996
      %v1074 = vpop.permute.xlu0 %1073
      %1075 = vset.pattern.permute.xlu0 0
      %1076 = vperm.xlu0 %1075, %v998
      %v1077 = vpop.permute.xlu0 %1076
      %1078 = vset.pattern.permute.xlu0 0
      %1079 = vperm.xlu0 %1078, %v1000
      %v1080 = vpop.permute.xlu0 %1079
      %1081 = vset.pattern.permute.xlu0 0
      %1082 = vperm.xlu0 %1081, %v1002
      %v1083 = vpop.permute.xlu0 %1082
      %1084 = vset.pattern.permute.xlu0 0
      %1085 = vperm.xlu0 %1084, %v1004
      %v1086 = vpop.permute.xlu0 %1085
      %1087 = vset.pattern.permute.xlu0 0
      %1088 = vperm.xlu0 %1087, %v1006
      %v1089 = vpop.permute.xlu0 %1088
      %1090 = vset.pattern.permute.xlu0 0
      %1091 = vperm.xlu0 %1090, %v1008
      %v1092 = vpop.permute.xlu0 %1091
      %1093 = vset.pattern.permute.xlu0 0
      %1094 = vperm.xlu0 %1093, %v1010
      %v1095 = vpop.permute.xlu0 %1094
      %1096 = vset.pattern.permute.xlu0 0
      %1097 = vperm.xlu0 %1096, %v1012
      %v1098 = vpop.permute.xlu0 %1097
      %1099 = vset.pattern.permute.xlu0 0
      %1100 = vperm.xlu0 %1099, %v1014
      %v1101 = vpop.permute.xlu0 %1100
      %1102 = vset.pattern.permute.xlu0 0
      %1103 = vperm.xlu0 %1102, %v1016
      %v1104 = vpop.permute.xlu0 %1103
      %1105 = vset.pattern.permute.xlu0 0
      %1106 = vperm.xlu0 %1105, %v1018
      %v1107 = vpop.permute.xlu0 %1106
      %1108 = vset.pattern.permute.xlu0 0
      %1109 = vperm.xlu0 %1108, %v1020
      %v1110 = vpop.permute.xlu0 %1109
      %1111 = vset.pattern.permute.xlu0 0
      %1112 = vperm.xlu0 %1111, %v1022
      %v1113 = vpop.permute.xlu0 %1112
      %1114 = vset.pattern.permute.xlu0 0
      %1115 = vperm.xlu0 %1114, %v1024
      %v1116 = vpop.permute.xlu0 %1115
      %1117 = vset.pattern.permute.xlu0 0
      %1118 = vperm.xlu0 %1117, %v1026
      %v1119 = vpop.permute.xlu0 %1118
      %1120 = vset.pattern.permute.xlu0 0
      %1121 = vperm.xlu0 %1120, %v1028
      %v1122 = vpop.permute.xlu0 %1121
      %1123 = vset.pattern.permute.xlu0 0
      %1124 = vperm.xlu0 %1123, %v1030
      %v1125 = vpop.permute.xlu0 %1124
      %1126 = vset.pattern.permute.xlu0 0
      %1127 = vperm.xlu0 %1126, %v1032
      %v1128 = vpop.permute.xlu0 %1127
      %v1129 = vlaneseq
      %v1130 = vshrl.u32 %v1129, 7
      %v1131 = vsub.s32 %v700, %v1130
      %v1132 = vrot.slane %v1059, %v1131
      %v1133 = vlaneseq
      %v1134 = vshrl.u32 %v1133, 7
      %v1135 = vsub.s32 %v700, %v1134
      %v1136 = vrot.slane %v1062, %v1135
      %v1137 = vlaneseq
      %v1138 = vshrl.u32 %v1137, 7
      %v1139 = vsub.s32 %v700, %v1138
      %v1140 = vrot.slane %v1065, %v1139
      %v1141 = vlaneseq
      %v1142 = vshrl.u32 %v1141, 7
      %v1143 = vsub.s32 %v700, %v1142
      %v1144 = vrot.slane %v1068, %v1143
      %v1145 = vlaneseq
      %v1146 = vshrl.u32 %v1145, 7
      %v1147 = vsub.s32 %v700, %v1146
      %v1148 = vrot.slane %v1071, %v1147
      %v1149 = vlaneseq
      %v1150 = vshrl.u32 %v1149, 7
      %v1151 = vsub.s32 %v700, %v1150
      %v1152 = vrot.slane %v1074, %v1151
      %v1153 = vlaneseq
      %v1154 = vshrl.u32 %v1153, 7
      %v1155 = vsub.s32 %v700, %v1154
      %v1156 = vrot.slane %v1077, %v1155
      %v1157 = vlaneseq
      %v1158 = vshrl.u32 %v1157, 7
      %v1159 = vsub.s32 %v700, %v1158
      %v1160 = vrot.slane %v1080, %v1159
      %v1161 = vlaneseq
      %v1162 = vshrl.u32 %v1161, 7
      %v1163 = vsub.s32 %v700, %v1162
      %v1164 = vrot.slane %v1083, %v1163
      %v1165 = vlaneseq
      %v1166 = vshrl.u32 %v1165, 7
      %v1167 = vsub.s32 %v700, %v1166
      %v1168 = vrot.slane %v1086, %v1167
      %v1169 = vlaneseq
      %v1170 = vshrl.u32 %v1169, 7
      %v1171 = vsub.s32 %v700, %v1170
      %v1172 = vrot.slane %v1089, %v1171
      %v1173 = vlaneseq
      %v1174 = vshrl.u32 %v1173, 7
      %v1175 = vsub.s32 %v700, %v1174
      %v1176 = vrot.slane %v1092, %v1175
      %v1177 = vlaneseq
      %v1178 = vshrl.u32 %v1177, 7
      %v1179 = vsub.s32 %v700, %v1178
      %v1180 = vrot.slane %v1095, %v1179
      %v1181 = vlaneseq
      %v1182 = vshrl.u32 %v1181, 7
      %v1183 = vsub.s32 %v700, %v1182
      %v1184 = vrot.slane %v1098, %v1183
      %v1185 = vlaneseq
      %v1186 = vshrl.u32 %v1185, 7
      %v1187 = vsub.s32 %v700, %v1186
      %v1188 = vrot.slane %v1101, %v1187
      %v1189 = vlaneseq
      %v1190 = vshrl.u32 %v1189, 7
      %v1191 = vsub.s32 %v700, %v1190
      %v1192 = vrot.slane %v1104, %v1191
      %v1193 = vlaneseq
      %v1194 = vshrl.u32 %v1193, 7
      %v1195 = vsub.s32 %v700, %v1194
      %v1196 = vrot.slane %v1107, %v1195
      %v1197 = vlaneseq
      %v1198 = vshrl.u32 %v1197, 7
      %v1199 = vsub.s32 %v700, %v1198
      %v1200 = vrot.slane %v1110, %v1199
      %v1201 = vlaneseq
      %v1202 = vshrl.u32 %v1201, 7
      %v1203 = vsub.s32 %v700, %v1202
      %v1204 = vrot.slane %v1113, %v1203
      %v1205 = vlaneseq
      %v1206 = vshrl.u32 %v1205, 7
      %v1207 = vsub.s32 %v700, %v1206
      %v1208 = vrot.slane %v1116, %v1207
      %v1209 = vlaneseq
      %v1210 = vshrl.u32 %v1209, 7
      %v1211 = vsub.s32 %v700, %v1210
      %v1212 = vrot.slane %v1119, %v1211
      %v1213 = vlaneseq
      %v1214 = vshrl.u32 %v1213, 7
      %v1215 = vsub.s32 %v700, %v1214
      %v1216 = vrot.slane %v1122, %v1215
      %v1217 = vlaneseq
      %v1218 = vshrl.u32 %v1217, 7
      %v1219 = vsub.s32 %v700, %v1218
      %v1220 = vrot.slane %v1125, %v1219
      %v1221 = vlaneseq
      %v1222 = vshrl.u32 %v1221, 7
      %v1223 = vsub.s32 %v700, %v1222
      %v1224 = vrot.slane %v1128, %v1223
      %v1225 = vsel %vm797, %v1136, %v1132
      %v1226 = vsel %vm799, %v1140, %v1225
      %v1227 = vsel %vm801, %v1144, %v1226
      %v1228 = vsel %vm803, %v1148, %v1227
      %v1229 = vsel %vm805, %v1152, %v1228
      %v1230 = vsel %vm807, %v1156, %v1229
      %v1231 = vsel %vm809, %v1160, %v1230
      %v1232 = vsel %vm797, %v1168, %v1164
      %v1233 = vsel %vm799, %v1172, %v1232
      %v1234 = vsel %vm801, %v1176, %v1233
      %v1235 = vsel %vm803, %v1180, %v1234
      %v1236 = vsel %vm805, %v1184, %v1235
      %v1237 = vsel %vm807, %v1188, %v1236
      %v1238 = vsel %vm809, %v1192, %v1237
      %v1239 = vsel %vm797, %v1200, %v1196
      %v1240 = vsel %vm799, %v1204, %v1239
      %v1241 = vsel %vm801, %v1208, %v1240
      %v1242 = vsel %vm803, %v1212, %v1241
      %v1243 = vsel %vm805, %v1216, %v1242
      %v1244 = vsel %vm807, %v1220, %v1243
      %v1245 = vsel %vm809, %v1224, %v1244
      %v1249 = vsel %vm828, %v1231, 0.0
      %1250 = vadd.xlane.f32.xlu0 %v1249
      %v1251 = vpop.xlane.xlu0 %1250
      %v1252 = vsel %vm828, %v1238, 0.0
      %1253 = vadd.xlane.f32.xlu0 %v1252
      %v1254 = vpop.xlane.xlu0 %1253
      %v1255 = vsel %vm828, %v1245, 0.0
      %1256 = vadd.xlane.f32.xlu0 %v1255
      %v1257 = vpop.xlane.xlu0 %1256
      %v1258 = vrcp.pop %v1251
      %v1259 = vrcp.pop %v1254
      %v1260 = vrcp.pop %v1257
      %v1264 = vlaneseq
      %v1265 = vshrl.u32 %v1264, 7
      %v1266 = vsub.s32 0, %v1265
      %v1267 = vrot.slane %v1258, %v1266
      %v1268 = vlaneseq
      %v1269 = vshrl.u32 %v1268, 7
      %v1270 = vsub.s32 1, %v1269
      %v1271 = vrot.slane %v1258, %v1270
      %v1272 = vlaneseq
      %v1273 = vshrl.u32 %v1272, 7
      %v1274 = vsub.s32 2, %v1273
      %v1275 = vrot.slane %v1258, %v1274
      %v1276 = vlaneseq
      %v1277 = vshrl.u32 %v1276, 7
      %v1278 = vsub.s32 3, %v1277
      %v1279 = vrot.slane %v1258, %v1278
      %v1280 = vlaneseq
      %v1281 = vshrl.u32 %v1280, 7
      %v1282 = vsub.s32 4, %v1281
      %v1283 = vrot.slane %v1258, %v1282
      %v1284 = vlaneseq
      %v1285 = vshrl.u32 %v1284, 7
      %v1286 = vsub.s32 5, %v1285
      %v1287 = vrot.slane %v1258, %v1286
      %v1288 = vlaneseq
      %v1289 = vshrl.u32 %v1288, 7
      %v1290 = vsub.s32 6, %v1289
      %v1291 = vrot.slane %v1258, %v1290
      %v1292 = vlaneseq
      %v1293 = vshrl.u32 %v1292, 7
      %v1294 = vsub.s32 7, %v1293
      %v1295 = vrot.slane %v1258, %v1294
      %v1296 = vlaneseq
      %v1297 = vshrl.u32 %v1296, 7
      %v1298 = vsub.s32 0, %v1297
      %v1299 = vrot.slane %v1259, %v1298
      %v1300 = vlaneseq
      %v1301 = vshrl.u32 %v1300, 7
      %v1302 = vsub.s32 1, %v1301
      %v1303 = vrot.slane %v1259, %v1302
      %v1304 = vlaneseq
      %v1305 = vshrl.u32 %v1304, 7
      %v1306 = vsub.s32 2, %v1305
      %v1307 = vrot.slane %v1259, %v1306
      %v1308 = vlaneseq
      %v1309 = vshrl.u32 %v1308, 7
      %v1310 = vsub.s32 3, %v1309
      %v1311 = vrot.slane %v1259, %v1310
      %v1312 = vlaneseq
      %v1313 = vshrl.u32 %v1312, 7
      %v1314 = vsub.s32 4, %v1313
      %v1315 = vrot.slane %v1259, %v1314
      %v1316 = vlaneseq
      %v1317 = vshrl.u32 %v1316, 7
      %v1318 = vsub.s32 5, %v1317
      %v1319 = vrot.slane %v1259, %v1318
      %v1320 = vlaneseq
      %v1321 = vshrl.u32 %v1320, 7
      %v1322 = vsub.s32 6, %v1321
      %v1323 = vrot.slane %v1259, %v1322
      %v1324 = vlaneseq
      %v1325 = vshrl.u32 %v1324, 7
      %v1326 = vsub.s32 7, %v1325
      %v1327 = vrot.slane %v1259, %v1326
      %v1328 = vlaneseq
      %v1329 = vshrl.u32 %v1328, 7
      %v1330 = vsub.s32 0, %v1329
      %v1331 = vrot.slane %v1260, %v1330
      %v1332 = vlaneseq
      %v1333 = vshrl.u32 %v1332, 7
      %v1334 = vsub.s32 1, %v1333
      %v1335 = vrot.slane %v1260, %v1334
      %v1336 = vlaneseq
      %v1337 = vshrl.u32 %v1336, 7
      %v1338 = vsub.s32 2, %v1337
      %v1339 = vrot.slane %v1260, %v1338
      %v1340 = vlaneseq
      %v1341 = vshrl.u32 %v1340, 7
      %v1342 = vsub.s32 3, %v1341
      %v1343 = vrot.slane %v1260, %v1342
      %v1344 = vlaneseq
      %v1345 = vshrl.u32 %v1344, 7
      %v1346 = vsub.s32 4, %v1345
      %v1347 = vrot.slane %v1260, %v1346
      %v1348 = vlaneseq
      %v1349 = vshrl.u32 %v1348, 7
      %v1350 = vsub.s32 5, %v1349
      %v1351 = vrot.slane %v1260, %v1350
      %v1352 = vlaneseq
      %v1353 = vshrl.u32 %v1352, 7
      %v1354 = vsub.s32 6, %v1353
      %v1355 = vrot.slane %v1260, %v1354
      %v1356 = vlaneseq
      %v1357 = vshrl.u32 %v1356, 7
      %v1358 = vsub.s32 7, %v1357
      %v1359 = vrot.slane %v1260, %v1358
      %v1384 = vmul.f32 %v986, %v1267
      %v1385 = vmul.f32 %v988, %v1271
      %v1386 = vmul.f32 %v990, %v1275
      %v1387 = vmul.f32 %v992, %v1279
      %v1388 = vmul.f32 %v994, %v1283
      %v1389 = vmul.f32 %v996, %v1287
      %v1390 = vmul.f32 %v998, %v1291
      %v1391 = vmul.f32 %v1000, %v1295
      %v1392 = vmul.f32 %v1002, %v1299
      %v1393 = vmul.f32 %v1004, %v1303
      %v1394 = vmul.f32 %v1006, %v1307
      %v1395 = vmul.f32 %v1008, %v1311
      %v1396 = vmul.f32 %v1010, %v1315
      %v1397 = vmul.f32 %v1012, %v1319
      %v1398 = vmul.f32 %v1014, %v1323
      %v1399 = vmul.f32 %v1016, %v1327
      %v1400 = vmul.f32 %v1018, %v1331
      %v1401 = vmul.f32 %v1020, %v1335
      %v1402 = vmul.f32 %v1022, %v1339
      %v1403 = vmul.f32 %v1024, %v1343
      %v1404 = vmul.f32 %v1026, %v1347
      %v1405 = vmul.f32 %v1028, %v1351
      %v1406 = vmul.f32 %v1030, %v1355
      %v1407 = vmul.f32 %v1032, %v1359
      %1409 = vset.pattern.permute.xlu0 0
      %1410 = vperm.xlu0 %1409, %v1384
      %v1411 = vpop.permute.xlu0 %1410
      %1414 = vset.pattern.permute.xlu0 0
      %1415 = vperm.xlu0 %1414, %v1385
      %v1416 = vpop.permute.xlu0 %1415
      %1419 = vset.pattern.permute.xlu0 0
      %1420 = vperm.xlu0 %1419, %v1386
      %v1421 = vpop.permute.xlu0 %1420
      %1424 = vset.pattern.permute.xlu0 0
      %1425 = vperm.xlu0 %1424, %v1387
      %v1426 = vpop.permute.xlu0 %1425
      %1429 = vset.pattern.permute.xlu0 0
      %1430 = vperm.xlu0 %1429, %v1388
      %v1431 = vpop.permute.xlu0 %1430
      %1434 = vset.pattern.permute.xlu0 0
      %1435 = vperm.xlu0 %1434, %v1389
      %v1436 = vpop.permute.xlu0 %1435
      %1439 = vset.pattern.permute.xlu0 0
      %1440 = vperm.xlu0 %1439, %v1390
      %v1441 = vpop.permute.xlu0 %1440
      %1444 = vset.pattern.permute.xlu0 0
      %1445 = vperm.xlu0 %1444, %v1391
      %v1446 = vpop.permute.xlu0 %1445
      %1449 = vset.pattern.permute.xlu0 0
      %1450 = vperm.xlu0 %1449, %v1392
      %v1451 = vpop.permute.xlu0 %1450
      %1454 = vset.pattern.permute.xlu0 0
      %1455 = vperm.xlu0 %1454, %v1393
      %v1456 = vpop.permute.xlu0 %1455
      %1459 = vset.pattern.permute.xlu0 0
      %1460 = vperm.xlu0 %1459, %v1394
      %v1461 = vpop.permute.xlu0 %1460
      %1464 = vset.pattern.permute.xlu0 0
      %1465 = vperm.xlu0 %1464, %v1395
      %v1466 = vpop.permute.xlu0 %1465
      %1469 = vset.pattern.permute.xlu0 0
      %1470 = vperm.xlu0 %1469, %v1396
      %v1471 = vpop.permute.xlu0 %1470
      %1474 = vset.pattern.permute.xlu0 0
      %1475 = vperm.xlu0 %1474, %v1397
      %v1476 = vpop.permute.xlu0 %1475
      %1479 = vset.pattern.permute.xlu0 0
      %1480 = vperm.xlu0 %1479, %v1398
      %v1481 = vpop.permute.xlu0 %1480
      %1484 = vset.pattern.permute.xlu0 0
      %1485 = vperm.xlu0 %1484, %v1399
      %v1486 = vpop.permute.xlu0 %1485
      %1489 = vset.pattern.permute.xlu0 0
      %1490 = vperm.xlu0 %1489, %v1400
      %v1491 = vpop.permute.xlu0 %1490
      %1494 = vset.pattern.permute.xlu0 0
      %1495 = vperm.xlu0 %1494, %v1401
      %v1496 = vpop.permute.xlu0 %1495
      %1499 = vset.pattern.permute.xlu0 0
      %1500 = vperm.xlu0 %1499, %v1402
      %v1501 = vpop.permute.xlu0 %1500
      %1504 = vset.pattern.permute.xlu0 0
      %1505 = vperm.xlu0 %1504, %v1403
      %v1506 = vpop.permute.xlu0 %1505
      %1509 = vset.pattern.permute.xlu0 0
      %1510 = vperm.xlu0 %1509, %v1404
      %v1511 = vpop.permute.xlu0 %1510
      %1514 = vset.pattern.permute.xlu0 0
      %1515 = vperm.xlu0 %1514, %v1405
      %v1516 = vpop.permute.xlu0 %1515
      %1519 = vset.pattern.permute.xlu0 0
      %1520 = vperm.xlu0 %1519, %v1406
      %v1521 = vpop.permute.xlu0 %1520
      %1524 = vset.pattern.permute.xlu0 0
      %1525 = vperm.xlu0 %1524, %v1407
      %v1526 = vpop.permute.xlu0 %1525
      %v1528 = vmul.f32 %v1411, %v229
      %v1529 = vmul.f32 %v1416, %v230
      %v1530 = vmul.f32 %v1421, %v231
      %v1531 = vmul.f32 %v1426, %v232
      %v1532 = vmul.f32 %v1431, %v233
      %v1533 = vmul.f32 %v1436, %v234
      %v1534 = vmul.f32 %v1441, %v235
      %v1535 = vmul.f32 %v1446, %v236
      %v1536 = vmul.f32 %v1451, %v237
      %v1537 = vmul.f32 %v1456, %v238
      %v1538 = vmul.f32 %v1461, %v239
      %v1539 = vmul.f32 %v1466, %v240
      %v1540 = vmul.f32 %v1471, %v241
      %v1541 = vmul.f32 %v1476, %v242
      %v1542 = vmul.f32 %v1481, %v243
      %v1543 = vmul.f32 %v1486, %v244
      %v1544 = vmul.f32 %v1491, %v245
      %v1545 = vmul.f32 %v1496, %v246
      %v1546 = vmul.f32 %v1501, %v247
      %v1547 = vmul.f32 %v1506, %v248
      %v1548 = vmul.f32 %v1511, %v249
      %v1549 = vmul.f32 %v1516, %v250
      %v1550 = vmul.f32 %v1521, %v251
      %v1551 = vmul.f32 %v1526, %v252
      %v1552 = vsel %vm264, %v1528, 0.0
      %v1553 = vrot.slane %v1552, 4
      %v1554 = vadd.f32 %v1552, %v1553
      %v1555 = vrot.slane %v1554, 2
      %v1556 = vadd.f32 %v1554, %v1555
      %v1557 = vrot.slane %v1556, 1
      %v1558 = vadd.f32 %v1556, %v1557
      %v1559 = vsel %vm264, %v1529, 0.0
      %v1560 = vrot.slane %v1559, 4
      %v1561 = vadd.f32 %v1559, %v1560
      %v1562 = vrot.slane %v1561, 2
      %v1563 = vadd.f32 %v1561, %v1562
      %v1564 = vrot.slane %v1563, 1
      %v1565 = vadd.f32 %v1563, %v1564
      %v1566 = vsel %vm264, %v1530, 0.0
      %v1567 = vrot.slane %v1566, 4
      %v1568 = vadd.f32 %v1566, %v1567
      %v1569 = vrot.slane %v1568, 2
      %v1570 = vadd.f32 %v1568, %v1569
      %v1571 = vrot.slane %v1570, 1
      %v1572 = vadd.f32 %v1570, %v1571
      %v1573 = vsel %vm264, %v1531, 0.0
      %v1574 = vrot.slane %v1573, 4
      %v1575 = vadd.f32 %v1573, %v1574
      %v1576 = vrot.slane %v1575, 2
      %v1577 = vadd.f32 %v1575, %v1576
      %v1578 = vrot.slane %v1577, 1
      %v1579 = vadd.f32 %v1577, %v1578
      %v1580 = vsel %vm264, %v1532, 0.0
      %v1581 = vrot.slane %v1580, 4
      %v1582 = vadd.f32 %v1580, %v1581
      %v1583 = vrot.slane %v1582, 2
      %v1584 = vadd.f32 %v1582, %v1583
      %v1585 = vrot.slane %v1584, 1
      %v1586 = vadd.f32 %v1584, %v1585
      %v1587 = vsel %vm264, %v1533, 0.0
      %v1588 = vrot.slane %v1587, 4
      %v1589 = vadd.f32 %v1587, %v1588
      %v1590 = vrot.slane %v1589, 2
      %v1591 = vadd.f32 %v1589, %v1590
      %v1592 = vrot.slane %v1591, 1
      %v1593 = vadd.f32 %v1591, %v1592
      %v1594 = vsel %vm264, %v1534, 0.0
      %v1595 = vrot.slane %v1594, 4
      %v1596 = vadd.f32 %v1594, %v1595
      %v1597 = vrot.slane %v1596, 2
      %v1598 = vadd.f32 %v1596, %v1597
      %v1599 = vrot.slane %v1598, 1
      %v1600 = vadd.f32 %v1598, %v1599
      %v1601 = vsel %vm264, %v1535, 0.0
      %v1602 = vrot.slane %v1601, 4
      %v1603 = vadd.f32 %v1601, %v1602
      %v1604 = vrot.slane %v1603, 2
      %v1605 = vadd.f32 %v1603, %v1604
      %v1606 = vrot.slane %v1605, 1
      %v1607 = vadd.f32 %v1605, %v1606
      %v1608 = vsel %vm264, %v1536, 0.0
      %v1609 = vrot.slane %v1608, 4
      %v1610 = vadd.f32 %v1608, %v1609
      %v1611 = vrot.slane %v1610, 2
      %v1612 = vadd.f32 %v1610, %v1611
      %v1613 = vrot.slane %v1612, 1
      %v1614 = vadd.f32 %v1612, %v1613
      %v1615 = vsel %vm264, %v1537, 0.0
      %v1616 = vrot.slane %v1615, 4
      %v1617 = vadd.f32 %v1615, %v1616
      %v1618 = vrot.slane %v1617, 2
      %v1619 = vadd.f32 %v1617, %v1618
      %v1620 = vrot.slane %v1619, 1
      %v1621 = vadd.f32 %v1619, %v1620
      %v1622 = vsel %vm264, %v1538, 0.0
      %v1623 = vrot.slane %v1622, 4
      %v1624 = vadd.f32 %v1622, %v1623
      %v1625 = vrot.slane %v1624, 2
      %v1626 = vadd.f32 %v1624, %v1625
      %v1627 = vrot.slane %v1626, 1
      %v1628 = vadd.f32 %v1626, %v1627
      %v1629 = vsel %vm264, %v1539, 0.0
      %v1630 = vrot.slane %v1629, 4
      %v1631 = vadd.f32 %v1629, %v1630
      %v1632 = vrot.slane %v1631, 2
      %v1633 = vadd.f32 %v1631, %v1632
      %v1634 = vrot.slane %v1633, 1
      %v1635 = vadd.f32 %v1633, %v1634
      %v1636 = vsel %vm264, %v1540, 0.0
      %v1637 = vrot.slane %v1636, 4
      %v1638 = vadd.f32 %v1636, %v1637
      %v1639 = vrot.slane %v1638, 2
      %v1640 = vadd.f32 %v1638, %v1639
      %v1641 = vrot.slane %v1640, 1
      %v1642 = vadd.f32 %v1640, %v1641
      %v1643 = vsel %vm264, %v1541, 0.0
      %v1644 = vrot.slane %v1643, 4
      %v1645 = vadd.f32 %v1643, %v1644
      %v1646 = vrot.slane %v1645, 2
      %v1647 = vadd.f32 %v1645, %v1646
      %v1648 = vrot.slane %v1647, 1
      %v1649 = vadd.f32 %v1647, %v1648
      %v1650 = vsel %vm264, %v1542, 0.0
      %v1651 = vrot.slane %v1650, 4
      %v1652 = vadd.f32 %v1650, %v1651
      %v1653 = vrot.slane %v1652, 2
      %v1654 = vadd.f32 %v1652, %v1653
      %v1655 = vrot.slane %v1654, 1
      %v1656 = vadd.f32 %v1654, %v1655
      %v1657 = vsel %vm264, %v1543, 0.0
      %v1658 = vrot.slane %v1657, 4
      %v1659 = vadd.f32 %v1657, %v1658
      %v1660 = vrot.slane %v1659, 2
      %v1661 = vadd.f32 %v1659, %v1660
      %v1662 = vrot.slane %v1661, 1
      %v1663 = vadd.f32 %v1661, %v1662
      %v1664 = vsel %vm264, %v1544, 0.0
      %v1665 = vrot.slane %v1664, 4
      %v1666 = vadd.f32 %v1664, %v1665
      %v1667 = vrot.slane %v1666, 2
      %v1668 = vadd.f32 %v1666, %v1667
      %v1669 = vrot.slane %v1668, 1
      %v1670 = vadd.f32 %v1668, %v1669
      %v1671 = vsel %vm264, %v1545, 0.0
      %v1672 = vrot.slane %v1671, 4
      %v1673 = vadd.f32 %v1671, %v1672
      %v1674 = vrot.slane %v1673, 2
      %v1675 = vadd.f32 %v1673, %v1674
      %v1676 = vrot.slane %v1675, 1
      %v1677 = vadd.f32 %v1675, %v1676
      %v1678 = vsel %vm264, %v1546, 0.0
      %v1679 = vrot.slane %v1678, 4
      %v1680 = vadd.f32 %v1678, %v1679
      %v1681 = vrot.slane %v1680, 2
      %v1682 = vadd.f32 %v1680, %v1681
      %v1683 = vrot.slane %v1682, 1
      %v1684 = vadd.f32 %v1682, %v1683
      %v1685 = vsel %vm264, %v1547, 0.0
      %v1686 = vrot.slane %v1685, 4
      %v1687 = vadd.f32 %v1685, %v1686
      %v1688 = vrot.slane %v1687, 2
      %v1689 = vadd.f32 %v1687, %v1688
      %v1690 = vrot.slane %v1689, 1
      %v1691 = vadd.f32 %v1689, %v1690
      %v1692 = vsel %vm264, %v1548, 0.0
      %v1693 = vrot.slane %v1692, 4
      %v1694 = vadd.f32 %v1692, %v1693
      %v1695 = vrot.slane %v1694, 2
      %v1696 = vadd.f32 %v1694, %v1695
      %v1697 = vrot.slane %v1696, 1
      %v1698 = vadd.f32 %v1696, %v1697
      %v1699 = vsel %vm264, %v1549, 0.0
      %v1700 = vrot.slane %v1699, 4
      %v1701 = vadd.f32 %v1699, %v1700
      %v1702 = vrot.slane %v1701, 2
      %v1703 = vadd.f32 %v1701, %v1702
      %v1704 = vrot.slane %v1703, 1
      %v1705 = vadd.f32 %v1703, %v1704
      %v1706 = vsel %vm264, %v1550, 0.0
      %v1707 = vrot.slane %v1706, 4
      %v1708 = vadd.f32 %v1706, %v1707
      %v1709 = vrot.slane %v1708, 2
      %v1710 = vadd.f32 %v1708, %v1709
      %v1711 = vrot.slane %v1710, 1
      %v1712 = vadd.f32 %v1710, %v1711
      %v1713 = vsel %vm264, %v1551, 0.0
      %v1714 = vrot.slane %v1713, 4
      %v1715 = vadd.f32 %v1713, %v1714
      %v1716 = vrot.slane %v1715, 2
      %v1717 = vadd.f32 %v1715, %v1716
      %v1718 = vrot.slane %v1717, 1
      %v1719 = vadd.f32 %v1717, %v1718
      %v1744 = vsel %vm797, %v1565, %v1558
      %v1745 = vsel %vm799, %v1572, %v1744
      %v1746 = vsel %vm801, %v1579, %v1745
      %v1747 = vsel %vm803, %v1586, %v1746
      %v1748 = vsel %vm805, %v1593, %v1747
      %v1749 = vsel %vm807, %v1600, %v1748
      %v1750 = vsel %vm809, %v1607, %v1749
      %v1751 = vsel %vm797, %v1621, %v1614
      %v1752 = vsel %vm799, %v1628, %v1751
      %v1753 = vsel %vm801, %v1635, %v1752
      %v1754 = vsel %vm803, %v1642, %v1753
      %v1755 = vsel %vm805, %v1649, %v1754
      %v1756 = vsel %vm807, %v1656, %v1755
      %v1757 = vsel %vm809, %v1663, %v1756
      %v1758 = vsel %vm797, %v1677, %v1670
      %v1759 = vsel %vm799, %v1684, %v1758
      %v1760 = vsel %vm801, %v1691, %v1759
      %v1761 = vsel %vm803, %v1698, %v1760
      %v1762 = vsel %vm805, %v1705, %v1761
      %v1763 = vsel %vm807, %v1712, %v1762
      %v1764 = vsel %vm809, %v1719, %v1763
      %1768 = vst.msk [vmem:[%s227] sm:$0xff] %vm264, %v1750
      %1769 = vst.msk [vmem:[%s227 + $0x8] sm:$0xff] %vm264, %v1757
      %1770 = vst.msk [vmem:[%s227 + $0x10] sm:$0xff] %vm264, %v1764
      %s1771 = smul.u32 3, %s17
      %p1772 = scmp.lt.s32.totalorder %s1771, 5
      %s1773 = scalar_select %p1772, %s1771, 5
      %s1774 = smul.addr %s1773, 8
      %s1775 = scalar_lea.vmem %s5, %s1774
      // Predicated region
      $region41: #{tpu_custom_call.1} parent=39 // pred_check
        %p1776 = pneg %p145
      $region42: #{tpu_custom_call.1} parent=39 // pred_check_branch
        %1778 = sbr.rel (%p1776) target = $region44
      $region43: #{tpu_custom_call.1} parent=39 // pred_region
        %s1779 = smul.u32 3, %s17
      $region44: #{tpu_custom_call.1} parent=39 // pred_fallthru
        _
    $region40: #{tpu_custom_call.1} parent=5 // pred_fallthru
      _
    %p1780 = scmp.le.s32.totalorder 2, %s12
    // Predicated region
    $region45: #{tpu_custom_call.1} parent=5 // pred_check
      %p1781 = pneg %p1780
    $region46: #{tpu_custom_call.1} parent=5 // pred_check_branch
      %1783 = sbr.rel (%p1781) target = $region48
    $region47: #{tpu_custom_call.1} parent=5 // pred_region
      %s1784 = ssub.s32 %s12, 2
      // Predicated region
      $region49: #{tpu_custom_call.1} parent=47 // pred_check
        %p1785 = pneg %p151
      $region50: #{tpu_custom_call.1} parent=47 // pred_check_branch
        %1787 = sbr.rel (%p1785) target = $region52
      $region51: #{tpu_custom_call.1} parent=47 // pred_region
        %s1788 = smul.u32 3, %s18
        %p1789 = scmp.lt.s32.totalorder %s1788, 5
        %s1790 = scalar_select %p1789, %s1788, 5
        %s1791 = smul.addr %s1790, 8
        %s1792 = scalar_lea.vmem %s5, %s1791
      $region52: #{tpu_custom_call.1} parent=47 // pred_fallthru
        _
    $region48: #{tpu_custom_call.1} parent=5 // pred_fallthru
      _
  $region6: #{tpu_custom_call.1} parent=0 // loop_footer
    %s16 = sadd.s32 1, %s12
  $region7: #{tpu_custom_call.1} parent=0 // loop_footer_branch
    %11 = sbr.rel target = $region3
  $region8: #{tpu_custom_call.1} parent=0 // loop_exit
    _

</llo_original>
